<compile_context>
chip_gen: v6e
topology: v6e:2x2x1
jax: 0.10.0
libtpu: 0.0.40
codegen_flags: <defaults>
</compile_context>

<pallas_src>
import jax
import jax.numpy as jnp
from jax import lax
from jax.experimental import pallas as pl
from jax.experimental.pallas import tpu as pltpu


_POOL_CHUNK = 16  # bf16 sublane-tile height for the chunked f32 pool accumulation


def _round_up(x, m):
    return (x + m - 1) // m * m


def _head_kernel(x_ref, wf_ref, bf_ref, w1_ref, b1_ref, w2_ref, b2_ref, o_ref):
    tb, hw, c = x_ref.shape  # (TB, HW, C) feature block, channels on lanes

    # ---- global average pool over HW, accumulated in f32 -------------------
    # The 1/HW divisor and eval-mode BatchNorm are folded into (wf, bf) on the
    # host, so the pool is a plain spatial sum.  Accumulate chunk-by-chunk so
    # the bf16->f32 widen never needs a full-block f32 temp in VMEM.
    n_full = hw // _POOL_CHUNK
    rem = hw - n_full * _POOL_CHUNK

    def body(i, acc):
        off = pl.multiple_of(i * _POOL_CHUNK, _POOL_CHUNK)
        chunk = x_ref[:, pl.ds(off, _POOL_CHUNK), :]          # (TB, 16, C)
        return acc + jnp.sum(chunk.astype(jnp.float32), axis=1)

    pooled = lax.fori_loop(0, n_full, body,
                           jnp.zeros((tb, c), jnp.float32))   # (TB, C) f32
    if rem:                                                   # static tail
        tail = x_ref[:, n_full * _POOL_CHUNK:, :]             # (TB, rem, C)
        pooled = pooled + jnp.sum(tail.astype(jnp.float32), axis=1)

    # ---- fused [features.fc + BatchNorm1d(eval)] : (TB,2048) @ (2048,128) ---
    feat = jnp.dot(pooled, wf_ref[...],
                   preferred_element_type=jnp.float32) + bf_ref[...]

    # ---- fc1 + ReLU : (TB, 128) @ (128, 32) ---------------------------------
    h = jnp.dot(feat, w1_ref[...],
                preferred_element_type=jnp.float32) + b1_ref[...]
    h = jnp.maximum(h, 0.0)

    # Dropout(p=0.5) in eval mode is the identity.

    # ---- fc2 (32 -> 1) + sigmoid on the VPU (mul + lane reduce) -------------
    logit = jnp.sum(h * w2_ref[...], axis=-1, keepdims=True) + b2_ref[...]
    o_ref[...] = jax.nn.sigmoid(logit)


def net_head(x_feat, params, *, batch_tile=None):
    """Fused head on the pre-avgpool feature map.

    x_feat: (B, HW, 2048) channels-last feature map, streamed in its native
            dtype (the backbone should emit bf16 to halve HBM traffic).
    params: raw head params (see init_params), PyTorch parameterization.
    Returns (B, 1) sigmoid probabilities (float32).
    """
    (w_fc, b_fc, gamma, beta, run_mean, run_var, w1, b1, w2, b2) = params
    B, HW, C = x_feat.shape
    itemsize = jnp.dtype(x_feat.dtype).itemsize

    # ---- host-side constant folding (f32): BN(eval) + 1/HW pooling divisor --
    scale = gamma * jax.lax.rsqrt(run_var + 1e-5)                    # (1, 128)
    w_fold = (w_fc * (scale / HW)).astype(jnp.float32)               # (2048, 128)
    b_fold = ((b_fc - run_mean) * scale + beta).astype(jnp.float32)  # (1, 128)
    w1f = w1.astype(jnp.float32)
    b1f = b1.astype(jnp.float32)
    w2_row = w2.reshape(1, -1).astype(jnp.float32)                   # (1, 32)
    b2f = b2.astype(jnp.float32)                                     # (1, 1)

    # ---- generation-aware VMEM budget & batch tile --------------------------
    try:
        vmem_cap = int(pltpu.get_tpu_info().vmem_capacity_bytes)
    except Exception:           # query unavailable: assume v7x-sized (safe everywhere)
        vmem_cap = 64 << 20

    sublane = 16 if itemsize == 2 else 8
    hw_pad = _round_up(HW, sublane)
    # per batch row of VMEM: double-buffered input + f32 chunk temp + f32 acc
    per_row = 2 * hw_pad * C * itemsize + _POOL_CHUNK * C * 4 + C * 4
    tb_cap = 128 if vmem_cap >= (100 << 20) else 64   # v5e/v6e (128 MiB) vs v7x (64 MiB)
    if batch_tile is not None:
        tb_cap = min(tb_cap, int(batch_tile))

    if B <= 8:
        tb = B                                        # single exact block, no padding
    else:
        tb = (vmem_cap - (10 << 20)) // per_row
        tb = max(8, min((tb // 8) * 8, tb_cap))
        # keep >=2 grid steps so both v7x TensorCores get work under "parallel"
        tb = max(8, min(tb, _round_up(pl.cdiv(B, 2), 8)))

    grid = (pl.cdiv(B, tb),)   # ragged batch tail = masked partial block (no jnp.pad)

    const = lambda b: (0, 0)
    in_specs = [
        pl.BlockSpec((tb, HW, C), lambda b: (b, 0, 0)),   # streamed, double-buffered
        pl.BlockSpec(w_fold.shape, const),                # resident weights
        pl.BlockSpec(b_fold.shape, const),
        pl.BlockSpec(w1f.shape, const),
        pl.BlockSpec(b1f.shape, const),
        pl.BlockSpec(w2_row.shape, const),
        pl.BlockSpec(b2f.shape, const),
    ]
    out_spec = pl.BlockSpec((tb, 1), lambda b: (b, 0))

    # ---- explicit VMEM limit, capped by the queried physical capacity -------
    x_block_bytes = tb * hw_pad * C * itemsize
    param_bytes = sum(int(p.size) * 4
                      for p in (w_fold, b_fold, w1f, b1f, w2_row, b2f))
    vmem_need = (2 * x_block_bytes            # double-buffered feature block
                 + 2 * param_bytes            # (conservative) weight buffers
                 + _POOL_CHUNK * tb * C * 4   # one chunk's f32 widen temp
                 + tb * C * 4                 # f32 pool accumulator
                 + (4 << 20))                 # headroom (small temps / output)
    vmem_limit = min(max(vmem_need, 32 << 20), vmem_cap - (8 << 20))

    cost = pl.CostEstimate(
        flops=int(B * (HW * C + 2 * C * 128 + 2 * 128 * 32 + 2 * 32)),
        transcendentals=int(B),
        bytes_accessed=int(B * HW * C * itemsize + param_bytes + B * 4),
    )

    out = pl.pallas_call(
        _head_kernel,
        out_shape=jax.ShapeDtypeStruct((B, 1), jnp.float32),
        grid=grid,
        in_specs=in_specs,
        out_specs=out_spec,
        compiler_params=pltpu.CompilerParams(
            dimension_semantics=("parallel",),
            vmem_limit_bytes=int(vmem_limit),
        ),
        cost_estimate=cost,
    )(x_feat, w_fold, b_fold, w1f, b1f, w2_row, b2f)

    return out


def init_params(key):
    ks = jax.random.split(key, 8)
    # features.fc : Linear(2048, 128)
    w_fc = jax.random.normal(ks[0], (2048, 128), jnp.float32) * 0.02
    b_fc = jax.random.normal(ks[1], (1, 128), jnp.float32) * 0.01
    # BatchNorm1d(128) — weight/bias + running stats (deterministic, non-trivial)
    gamma = 1.0 + 0.1 * jax.random.normal(ks[2], (1, 128), jnp.float32)
    beta = 0.1 * jax.random.normal(ks[3], (1, 128), jnp.float32)
    run_mean = 0.1 * jax.random.normal(ks[4], (1, 128), jnp.float32)
    run_var = jnp.abs(1.0 + 0.1 * jax.random.normal(ks[5], (1, 128), jnp.float32))
    # fc1 : Linear(128, 32)
    w1 = jax.random.normal(ks[6], (128, 32), jnp.float32) * 0.05
    b1 = jnp.zeros((1, 32), jnp.float32)
    # fc2 : Linear(32, 1)
    w2 = jax.random.normal(ks[7], (32, 1), jnp.float32) * 0.1
    b2 = jnp.zeros((1, 1), jnp.float32)
    return (w_fc, b_fc, gamma, beta, run_mean, run_var, w1, b1, w2, b2)


def reference(x_feat, params):
    """Pure-JAX reference for the same head (eval-mode BN / dropout)."""
    w_fc, b_fc, gamma, beta, run_mean, run_var, w1, b1, w2, b2 = params
    pooled = jnp.mean(x_feat, axis=1)
    feat = pooled @ w_fc + b_fc
    bn = (feat - run_mean) * jax.lax.rsqrt(run_var + 1e-5) * gamma + beta
    h = jnp.maximum(bn @ w1 + b1, 0.0)
    return jax.nn.sigmoid(h @ w2 + b2)


if __name__ == "__main__":
    key = jax.random.PRNGKey(0)
    k_x, k_p = jax.random.split(key)

    B, C, H, W = 2, 2048, 7, 7
    # Stand-in for the ResNet50 backbone's pre-avgpool activation (NCHW),
    # transposed to channels-last [B, H*W, C].  A real backbone should emit
    # this layout in bf16 directly so the kernel reads 2 B/elem with no extra
    # wrapper-side cast or pad pass.
    x_nchw = jax.random.normal(k_x, (B, C, H, W), jnp.float32)
    x_feat = jnp.transpose(x_nchw, (0, 2, 3, 1)).reshape(B, H * W, C)
    x_feat_bf16 = x_feat.astype(jnp.bfloat16)   # simulated backbone output dtype

    params = init_params(k_p)

    out = jax.block_until_ready(net_head(x_feat_bf16, params))

    # Reference sees the same bf16-rounded features (f32 math) so the
    # comparison is apples-to-apples with the backbone's bf16 output.
    ref = reference(x_feat_bf16.astype(jnp.float32), params)

    assert out.shape == (B, 1)
    assert jnp.allclose(out, ref, atol=1e-4, rtol=1e-4), (out, ref)

    print("KERNEL_OK")
</pallas_src>

<mosaic_0001>
module attributes {stable_mosaic.version = 11 : i64} {
  func.func @_head_kernel(%arg0: i32, %arg1: memref<2x49x2048xbf16, #tpu.memory_space<vmem>>, %arg2: memref<2048x128xf32, #tpu.memory_space<vmem>>, %arg3: memref<1x128xf32, #tpu.memory_space<vmem>>, %arg4: memref<128x32xf32, #tpu.memory_space<vmem>>, %arg5: memref<1x32xf32, #tpu.memory_space<vmem>>, %arg6: memref<1x32xf32, #tpu.memory_space<vmem>>, %arg7: memref<1x1xf32, #tpu.memory_space<vmem>>, %arg8: memref<2x1xf32, #tpu.memory_space<vmem>>) attributes {dimension_semantics = [#tpu.dimension_semantics<parallel>], iteration_bounds = array<i64: 1>, scalar_prefetch = 0 : i64, scratch_operands = 0 : i64, tpu.core_type = #tpu.core_type<tc>, window_params = [{transform_indices = @transform_0, window_bounds = array<i64: 2, 49, 2048>}, {pipeline_mode = #tpu.pipeline_mode<synchronous>, transform_indices = @transform_1, window_bounds = array<i64: 2048, 128>}, {pipeline_mode = #tpu.pipeline_mode<synchronous>, transform_indices = @transform_2, window_bounds = array<i64: 1, 128>}, {pipeline_mode = #tpu.pipeline_mode<synchronous>, transform_indices = @transform_3, window_bounds = array<i64: 128, 32>}, {pipeline_mode = #tpu.pipeline_mode<synchronous>, transform_indices = @transform_4, window_bounds = array<i64: 1, 32>}, {pipeline_mode = #tpu.pipeline_mode<synchronous>, transform_indices = @transform_5, window_bounds = array<i64: 1, 32>}, {pipeline_mode = #tpu.pipeline_mode<synchronous>, transform_indices = @transform_6, window_bounds = array<i64: 1, 1>}, {transform_indices = @transform_7, window_bounds = array<i64: 2, 1>}]} {
    %cst = arith.constant 0.000000e+00 : f32
    %0 = vector.broadcast %cst : f32 to vector<2x2048xf32>
    %c0_i32 = arith.constant 0 : i32
    %c3_i32 = arith.constant 3 : i32
    %1 = arith.addi %c0_i32, %c3_i32 : i32
    %c1_i32 = arith.constant 1 : i32
    %2 = scf.for %arg9 = %c0_i32 to %1 step %c1_i32 iter_args(%arg10 = %0) -> (vector<2x2048xf32>)  : i32 {
      %c16_i32 = arith.constant 16 : i32
      %33 = arith.muli %arg9, %c16_i32 : i32
      %34 = tpu.assume_multiple %33, 16 : i32
      %c0_22 = arith.constant 0 : index
      %35 = arith.index_cast %34 : i32 to index
      %c0_23 = arith.constant 0 : index
      %36 = vector.load %arg1[%c0_22, %35, %c0_23] : memref<2x49x2048xbf16, #tpu.memory_space<vmem>>, vector<2x16x2048xbf16>
      %37 = arith.extf %36 : vector<2x16x2048xbf16> to vector<2x16x2048xf32>
      %cst_24 = arith.constant dense<0.000000e+00> : vector<2x2048xf32>
      %38 = vector.multi_reduction <add>, %37, %cst_24 [1] : vector<2x16x2048xf32> to vector<2x2048xf32>
      %39 = arith.addf %arg10, %38 : vector<2x2048xf32>
      scf.yield %39 : vector<2x2048xf32>
    }
    %c3_i32_0 = arith.constant 3 : i32
    %c0 = arith.constant 0 : index
    %c48 = arith.constant 48 : index
    %c0_1 = arith.constant 0 : index
    %3 = vector.load %arg1[%c0, %c48, %c0_1] : memref<2x49x2048xbf16, #tpu.memory_space<vmem>>, vector<2x1x2048xbf16>
    %4 = arith.extf %3 : vector<2x1x2048xbf16> to vector<2x1x2048xf32>
    %cst_2 = arith.constant dense<0.000000e+00> : vector<2x2048xf32>
    %5 = vector.multi_reduction <add>, %4, %cst_2 [1] : vector<2x1x2048xf32> to vector<2x2048xf32>
    %6 = arith.addf %2, %5 : vector<2x2048xf32>
    %c0_3 = arith.constant 0 : index
    %c0_4 = arith.constant 0 : index
    %7 = vector.load %arg2[%c0_3, %c0_4] : memref<2048x128xf32, #tpu.memory_space<vmem>>, vector<2048x128xf32>
    %cst_5 = arith.constant dense<0.000000e+00> : vector<2x128xf32>
    %8 = tpu.matmul %6, %7, %cst_5 {dimension_numbers = #tpu.dot_dimension_numbers<[1], [0], [0], [1], [0, 0, 1, 1], [], []>} : vector<2x2048xf32>, vector<2048x128xf32>, vector<2x128xf32> -> vector<2x128xf32>
    %c0_6 = arith.constant 0 : index
    %c0_7 = arith.constant 0 : index
    %9 = vector.load %arg3[%c0_6, %c0_7] : memref<1x128xf32, #tpu.memory_space<vmem>>, vector<1x128xf32>
    %10 = vector.broadcast %9 : vector<1x128xf32> to vector<2x128xf32>
    %11 = arith.addf %8, %10 : vector<2x128xf32>
    %c0_8 = arith.constant 0 : index
    %c0_9 = arith.constant 0 : index
    %12 = vector.load %arg4[%c0_8, %c0_9] : memref<128x32xf32, #tpu.memory_space<vmem>>, vector<128x32xf32>
    %cst_10 = arith.constant dense<0.000000e+00> : vector<2x32xf32>
    %13 = tpu.matmul %11, %12, %cst_10 {dimension_numbers = #tpu.dot_dimension_numbers<[1], [0], [0], [1], [0, 0, 1, 1], [], []>} : vector<2x128xf32>, vector<128x32xf32>, vector<2x32xf32> -> vector<2x32xf32>
    %c0_11 = arith.constant 0 : index
    %c0_12 = arith.constant 0 : index
    %14 = vector.load %arg5[%c0_11, %c0_12] : memref<1x32xf32, #tpu.memory_space<vmem>>, vector<1x32xf32>
    %15 = vector.broadcast %14 : vector<1x32xf32> to vector<2x32xf32>
    %16 = arith.addf %13, %15 : vector<2x32xf32>
    %cst_13 = arith.constant 0.000000e+00 : f32
    %17 = vector.broadcast %cst_13 : f32 to vector<2x32xf32>
    %18 = arith.maximumf %16, %17 : vector<2x32xf32>
    %c0_14 = arith.constant 0 : index
    %c0_15 = arith.constant 0 : index
    %19 = vector.load %arg6[%c0_14, %c0_15] : memref<1x32xf32, #tpu.memory_space<vmem>>, vector<1x32xf32>
    %20 = vector.broadcast %19 : vector<1x32xf32> to vector<2x32xf32>
    %21 = arith.mulf %18, %20 : vector<2x32xf32>
    %cst_16 = arith.constant dense<0.000000e+00> : vector<2xf32>
    %22 = vector.multi_reduction <add>, %21, %cst_16 [1] : vector<2x32xf32> to vector<2xf32>
    %23 = vector.shape_cast %22 : vector<2xf32> to vector<2x1xf32>
    %c0_17 = arith.constant 0 : index
    %c0_18 = arith.constant 0 : index
    %24 = vector.load %arg7[%c0_17, %c0_18] : memref<1x1xf32, #tpu.memory_space<vmem>>, vector<1x1xf32>
    %25 = vector.broadcast %24 : vector<1x1xf32> to vector<2x1xf32>
    %26 = arith.addf %23, %25 : vector<2x1xf32>
    %27 = arith.negf %26 : vector<2x1xf32>
    %28 = math.exp %27 : vector<2x1xf32>
    %cst_19 = arith.constant 1.000000e+00 : f32
    %29 = vector.broadcast %cst_19 : f32 to vector<2x1xf32>
    %30 = arith.addf %29, %28 : vector<2x1xf32>
    %31 = arith.divf %29, %30 : vector<2x1xf32>
    %c0_20 = arith.constant 0 : index
    %c0_21 = arith.constant 0 : index
    %32 = vector.load %arg8[%c0_20, %c0_21] : memref<2x1xf32, #tpu.memory_space<vmem>>, vector<2x1xf32>
    tpu.vector_store %arg8[%c0_20, %c0_21], %31 {strides = array<i32>} : memref<2x1xf32, #tpu.memory_space<vmem>>, vector<2x1xf32>,
    return
  }
  func.func @transform_0(%arg0: i32) -> (i32, i32, i32) {
    %c0_i32 = arith.constant 0 : i32
    %c0_i32_0 = arith.constant 0 : i32
    %c0_i32_1 = arith.constant 0 : i32
    return %arg0, %c0_i32, %c0_i32_0 : i32, i32, i32
  }
  func.func @transform_1(%arg0: i32) -> (i32, i32) {
    %c0_i32 = arith.constant 0 : i32
    %c0_i32_0 = arith.constant 0 : i32
    %c0_i32_1 = arith.constant 0 : i32
    return %c0_i32, %c0_i32_0 : i32, i32
  }
  func.func @transform_2(%arg0: i32) -> (i32, i32) {
    %c0_i32 = arith.constant 0 : i32
    %c0_i32_0 = arith.constant 0 : i32
    %c0_i32_1 = arith.constant 0 : i32
    return %c0_i32, %c0_i32_0 : i32, i32
  }
  func.func @transform_3(%arg0: i32) -> (i32, i32) {
    %c0_i32 = arith.constant 0 : i32
    %c0_i32_0 = arith.constant 0 : i32
    %c0_i32_1 = arith.constant 0 : i32
    return %c0_i32, %c0_i32_0 : i32, i32
  }
  func.func @transform_4(%arg0: i32) -> (i32, i32) {
    %c0_i32 = arith.constant 0 : i32
    %c0_i32_0 = arith.constant 0 : i32
    %c0_i32_1 = arith.constant 0 : i32
    return %c0_i32, %c0_i32_0 : i32, i32
  }
  func.func @transform_5(%arg0: i32) -> (i32, i32) {
    %c0_i32 = arith.constant 0 : i32
    %c0_i32_0 = arith.constant 0 : i32
    %c0_i32_1 = arith.constant 0 : i32
    return %c0_i32, %c0_i32_0 : i32, i32
  }
  func.func @transform_6(%arg0: i32) -> (i32, i32) {
    %c0_i32 = arith.constant 0 : i32
    %c0_i32_0 = arith.constant 0 : i32
    %c0_i32_1 = arith.constant 0 : i32
    return %c0_i32, %c0_i32_0 : i32, i32
  }
  func.func @transform_7(%arg0: i32) -> (i32, i32) {
    %c0_i32 = arith.constant 0 : i32
    %c0_i32_0 = arith.constant 0 : i32
    return %arg0, %c0_i32 : i32, i32
  }
}

</mosaic_0001>

<llo_original>
// kernel: tpu_custom_call.1
$region0: #{tpu_custom_call.1}
  #allocation0 [shape = 'u32[]', space=smem, size = 0x4, offset = 0x4, fixed_abs, tag = 'smem constant byte address 0x4 - core index']
  #allocation1 [shape = 'u32[144,128]{1,0:T(1,128)}', space=vmem, size = 0x12000, scoped, tag = 'internal scratch']
  #allocation2 [shape = 'f32[1,1]{1,0:T(1,128)S(1)}', space=vmem, size = 0x200, scoped, tag = 'scoped memory for tpu_custom_call.1']
  %s0 = inlined_call_operand.vmem [shape: bf16[2,49,2048], index: 0, kind: input, shape index: {}]
  %s1 = inlined_call_operand.hbm [shape: f32[2048,128], index: 1, kind: input, shape index: {}]
  %s2 = inlined_call_operand.vmem [shape: f32[1,128], index: 2, kind: input, shape index: {}]
  %s3 = inlined_call_operand.vmem [shape: f32[128,32], index: 3, kind: input, shape index: {}]
  %s4 = inlined_call_operand.vmem [shape: f32[1,32], index: 4, kind: input, shape index: {}]
  %s5 = inlined_call_operand.vmem [shape: f32[1,32], index: 5, kind: input, shape index: {}]
  %s6 = inlined_call_operand.<no memory space> [shape: f32[1,1], index: 6, kind: input, shape index: {}]
  %s7 = inlined_call_operand.vmem [shape: f32[2,1], index: 7, kind: output, shape index: {}]
  %s8 = sld [smem:[#allocation0]]
  $region49: #{tpu_custom_call.1} parent=0
    _
  %s10 = ssub.s32 1, %s8
  %s11 = scalar_select 0, %s10, %s8
  %v12 = vstv %s6
  %13 = vst [vmem:[#allocation2] sm:$0x1] %v12
  $region1: #{tpu_custom_call.1} parent=0
    #allocation3 [shape = 'u8[1048576]{0}', space=vmem, size = 0x100000, scoped, tag = 'input window, operand 1, single buffered']
    #allocation4 [shape = 's32[1]{0}', space=sflag, size = 0x4, scoped, tag = 'scoped memory for tpu_custom_call.1']
    %14 = vsyncpa [#allocation4], 0
    // Predicated region
    $region2: #{tpu_custom_call.1} parent=1 // pred_check
      _
    $region3: #{tpu_custom_call.1} parent=1 // pred_check_branch
      %16 = sbr.rel (0) target = $region5
    $region4: #{tpu_custom_call.1} parent=1 // pred_region
      _
    $region5: #{tpu_custom_call.1} parent=1 // pred_fallthru
      _
    // Predicated region
    $region6: #{tpu_custom_call.1} parent=1 // pred_check
      _
    $region7: #{tpu_custom_call.1} parent=1 // pred_check_branch
      %18 = sbr.rel (0) target = $region9
    $region8: #{tpu_custom_call.1} parent=1 // pred_region
      %s20 = ssub.s32 32768, 32768
      %21 = vsyncadd [#allocation4], %s20
      %s22 = sshll.u32 [#allocation3], 4
      %s23 = int_to_ptr.vmem [resolvable:$true] %s22
      %28 = dma.hbm_to_vmem [thread:$0]  %s1, 32768, %s23, [#allocation4], 128, 128, 8
    $region9: #{tpu_custom_call.1} parent=1 // pred_fallthru
      _
    // Predicated region
    $region10: #{tpu_custom_call.1} parent=1 // pred_check
      _
    $region11: #{tpu_custom_call.1} parent=1 // pred_check_branch
      %30 = sbr.rel (0) target = $region13
    $region12: #{tpu_custom_call.1} parent=1 // pred_region
      _
    $region13: #{tpu_custom_call.1} parent=1 // pred_fallthru
      _
    // Predicated region
    $region14: #{tpu_custom_call.1} parent=1 // pred_check
      _
    $region15: #{tpu_custom_call.1} parent=1 // pred_check_branch
      %32 = sbr.rel (0) target = $region17
    $region16: #{tpu_custom_call.1} parent=1 // pred_region
      _
    $region17: #{tpu_custom_call.1} parent=1 // pred_fallthru
      _
    // Predicated region
    $region18: #{tpu_custom_call.1} parent=1 // pred_check
      _
    $region19: #{tpu_custom_call.1} parent=1 // pred_check_branch
      %34 = sbr.rel (0) target = $region21
    $region20: #{tpu_custom_call.1} parent=1 // pred_region
      _
    $region21: #{tpu_custom_call.1} parent=1 // pred_fallthru
      _
    // Predicated region
    $region22: #{tpu_custom_call.1} parent=1 // pred_check
      _
    $region23: #{tpu_custom_call.1} parent=1 // pred_check_branch
      %36 = sbr.rel (0) target = $region25
    $region24: #{tpu_custom_call.1} parent=1 // pred_region
      _
    $region25: #{tpu_custom_call.1} parent=1 // pred_fallthru
      _
    // Predicated region
    $region26: #{tpu_custom_call.1} parent=1 // pred_check
      _
    $region27: #{tpu_custom_call.1} parent=1 // pred_check_branch
      %38 = sbr.rel (0) target = $region29
    $region28: #{tpu_custom_call.1} parent=1 // pred_region
      _
    $region29: #{tpu_custom_call.1} parent=1 // pred_fallthru
      _
    // Predicated region
    $region30: #{tpu_custom_call.1} parent=1 // pred_check
      _
    $region31: #{tpu_custom_call.1} parent=1 // pred_check_branch
      %40 = sbr.rel (0) target = $region33
    $region32: #{tpu_custom_call.1} parent=1 // pred_region
      %41 = dma.done [#allocation4], 32768
    $region33: #{tpu_custom_call.1} parent=1 // pred_fallthru
      _
    loop: start=0, step=1, limit=3
    $region34: #{tpu_custom_call.1} parent=1 // loop_pre_header
      _
    $region35: #{tpu_custom_call.1} parent=1 // loop_header
      %s43 = sphi 0, %s47
      %p44 = scmp.ge.s32.totalorder %s43, 3
      %v48 = vphi 0.0, %v406
      %v49 = vphi 0.0, %v407
      %v50 = vphi 0.0, %v408
      %v51 = vphi 0.0, %v409
      %v52 = vphi 0.0, %v410
      %v53 = vphi 0.0, %v411
      %v54 = vphi 0.0, %v412
      %v55 = vphi 0.0, %v413
      %v56 = vphi 0.0, %v414
      %v57 = vphi 0.0, %v415
      %v58 = vphi 0.0, %v416
      %v59 = vphi 0.0, %v417
      %v60 = vphi 0.0, %v418
      %v61 = vphi 0.0, %v419
      %v62 = vphi 0.0, %v420
      %v63 = vphi 0.0, %v421
      %v64 = vphi 0.0, %v422
      %v65 = vphi 0.0, %v423
      %v66 = vphi 0.0, %v424
      %v67 = vphi 0.0, %v425
      %v68 = vphi 0.0, %v426
      %v69 = vphi 0.0, %v427
      %v70 = vphi 0.0, %v428
      %v71 = vphi 0.0, %v429
      %v72 = vphi 0.0, %v430
      %v73 = vphi 0.0, %v431
      %v74 = vphi 0.0, %v432
      %v75 = vphi 0.0, %v433
      %v76 = vphi 0.0, %v434
      %v77 = vphi 0.0, %v435
      %v78 = vphi 0.0, %v436
      %v79 = vphi 0.0, %v437
    $region36: #{tpu_custom_call.1} parent=1 // loop_header_branch
      %46 = sbr.rel (%p44) target = $region40
    $region37: #{tpu_custom_call.1} parent=1 // loop_body
      %s80 = smul.u32 %s43, 16
      %s81 = sshra.s32 %s80, 3
      %s82 = sand.u32 %s80, 7
      %s83 = smul.u32 %s81, 16
      %s84 = smul.addr %s83, 4
      %s85 = scalar_lea.vmem %s0, %s84
      %v86 = vld [vmem:[%s85] sm:$0xff]
      %v87 = vld [vmem:[%s85 + $0x8] sm:$0xff]
      %v88 = vld [vmem:[%s85 + $0x10] sm:$0xff]
      %v89 = vld [vmem:[%s85 + $0x18] sm:$0xff]
      %v90 = vld [vmem:[%s85 + $0x20] sm:$0xff]
      %v91 = vld [vmem:[%s85 + $0x28] sm:$0xff]
      %v92 = vld [vmem:[%s85 + $0x30] sm:$0xff]
      %v93 = vld [vmem:[%s85 + $0x38] sm:$0xff]
      %v94 = vld [vmem:[%s85 + $0x40] sm:$0xff]
      %v95 = vld [vmem:[%s85 + $0x48] sm:$0xff]
      %v96 = vld [vmem:[%s85 + $0x50] sm:$0xff]
      %v97 = vld [vmem:[%s85 + $0x58] sm:$0xff]
      %v98 = vld [vmem:[%s85 + $0x60] sm:$0xff]
      %v99 = vld [vmem:[%s85 + $0x68] sm:$0xff]
      %v100 = vld [vmem:[%s85 + $0x70] sm:$0xff]
      %v101 = vld [vmem:[%s85 + $0x78] sm:$0xff]
      %v102 = vld [vmem:[%s85 + $0x1c0] sm:$0xff]
      %v103 = vld [vmem:[%s85 + $0x1c8] sm:$0xff]
      %v104 = vld [vmem:[%s85 + $0x1d0] sm:$0xff]
      %v105 = vld [vmem:[%s85 + $0x1d8] sm:$0xff]
      %v106 = vld [vmem:[%s85 + $0x1e0] sm:$0xff]
      %v107 = vld [vmem:[%s85 + $0x1e8] sm:$0xff]
      %v108 = vld [vmem:[%s85 + $0x1f0] sm:$0xff]
      %v109 = vld [vmem:[%s85 + $0x1f8] sm:$0xff]
      %v110 = vld [vmem:[%s85 + $0x200] sm:$0xff]
      %v111 = vld [vmem:[%s85 + $0x208] sm:$0xff]
      %v112 = vld [vmem:[%s85 + $0x210] sm:$0xff]
      %v113 = vld [vmem:[%s85 + $0x218] sm:$0xff]
      %v114 = vld [vmem:[%s85 + $0x220] sm:$0xff]
      %v115 = vld [vmem:[%s85 + $0x228] sm:$0xff]
      %v116 = vld [vmem:[%s85 + $0x230] sm:$0xff]
      %v117 = vld [vmem:[%s85 + $0x238] sm:$0xff]
      %v118 = vunpack.c.l.bf16 %v86
      %v119 = vunpack.c.h.bf16 %v86
      %v120 = vunpack.c.l.bf16 %v87
      %v121 = vunpack.c.h.bf16 %v87
      %v122 = vunpack.c.l.bf16 %v88
      %v123 = vunpack.c.h.bf16 %v88
      %v124 = vunpack.c.l.bf16 %v89
      %v125 = vunpack.c.h.bf16 %v89
      %v126 = vunpack.c.l.bf16 %v90
      %v127 = vunpack.c.h.bf16 %v90
      %v128 = vunpack.c.l.bf16 %v91
      %v129 = vunpack.c.h.bf16 %v91
      %v130 = vunpack.c.l.bf16 %v92
      %v131 = vunpack.c.h.bf16 %v92
      %v132 = vunpack.c.l.bf16 %v93
      %v133 = vunpack.c.h.bf16 %v93
      %v134 = vunpack.c.l.bf16 %v94
      %v135 = vunpack.c.h.bf16 %v94
      %v136 = vunpack.c.l.bf16 %v95
      %v137 = vunpack.c.h.bf16 %v95
      %v138 = vunpack.c.l.bf16 %v96
      %v139 = vunpack.c.h.bf16 %v96
      %v140 = vunpack.c.l.bf16 %v97
      %v141 = vunpack.c.h.bf16 %v97
      %v142 = vunpack.c.l.bf16 %v98
      %v143 = vunpack.c.h.bf16 %v98
      %v144 = vunpack.c.l.bf16 %v99
      %v145 = vunpack.c.h.bf16 %v99
      %v146 = vunpack.c.l.bf16 %v100
      %v147 = vunpack.c.h.bf16 %v100
      %v148 = vunpack.c.l.bf16 %v101
      %v149 = vunpack.c.h.bf16 %v101
      %v150 = vunpack.c.l.bf16 %v102
      %v151 = vunpack.c.h.bf16 %v102
      %v152 = vunpack.c.l.bf16 %v103
      %v153 = vunpack.c.h.bf16 %v103
      %v154 = vunpack.c.l.bf16 %v104
      %v155 = vunpack.c.h.bf16 %v104
      %v156 = vunpack.c.l.bf16 %v105
      %v157 = vunpack.c.h.bf16 %v105
      %v158 = vunpack.c.l.bf16 %v106
      %v159 = vunpack.c.h.bf16 %v106
      %v160 = vunpack.c.l.bf16 %v107
      %v161 = vunpack.c.h.bf16 %v107
      %v162 = vunpack.c.l.bf16 %v108
      %v163 = vunpack.c.h.bf16 %v108
      %v164 = vunpack.c.l.bf16 %v109
      %v165 = vunpack.c.h.bf16 %v109
      %v166 = vunpack.c.l.bf16 %v110
      %v167 = vunpack.c.h.bf16 %v110
      %v168 = vunpack.c.l.bf16 %v111
      %v169 = vunpack.c.h.bf16 %v111
      %v170 = vunpack.c.l.bf16 %v112
      %v171 = vunpack.c.h.bf16 %v112
      %v172 = vunpack.c.l.bf16 %v113
      %v173 = vunpack.c.h.bf16 %v113
      %v174 = vunpack.c.l.bf16 %v114
      %v175 = vunpack.c.h.bf16 %v114
      %v176 = vunpack.c.l.bf16 %v115
      %v177 = vunpack.c.h.bf16 %v115
      %v178 = vunpack.c.l.bf16 %v116
      %v179 = vunpack.c.h.bf16 %v116
      %v180 = vunpack.c.l.bf16 %v117
      %v181 = vunpack.c.h.bf16 %v117
      %v182 = vadd.f32 %v118, %v134
      %v183 = vrot.slane %v182, 4
      %v184 = vadd.f32 %v182, %v183
      %v185 = vrot.slane %v184, 2
      %v186 = vadd.f32 %v184, %v185
      %v187 = vrot.slane %v186, 1
      %v188 = vadd.f32 %v186, %v187
      %v189 = vadd.f32 %v119, %v135
      %v190 = vrot.slane %v189, 4
      %v191 = vadd.f32 %v189, %v190
      %v192 = vrot.slane %v191, 2
      %v193 = vadd.f32 %v191, %v192
      %v194 = vrot.slane %v193, 1
      %v195 = vadd.f32 %v193, %v194
      %v196 = vadd.f32 %v120, %v136
      %v197 = vrot.slane %v196, 4
      %v198 = vadd.f32 %v196, %v197
      %v199 = vrot.slane %v198, 2
      %v200 = vadd.f32 %v198, %v199
      %v201 = vrot.slane %v200, 1
      %v202 = vadd.f32 %v200, %v201
      %v203 = vadd.f32 %v121, %v137
      %v204 = vrot.slane %v203, 4
      %v205 = vadd.f32 %v203, %v204
      %v206 = vrot.slane %v205, 2
      %v207 = vadd.f32 %v205, %v206
      %v208 = vrot.slane %v207, 1
      %v209 = vadd.f32 %v207, %v208
      %v210 = vadd.f32 %v122, %v138
      %v211 = vrot.slane %v210, 4
      %v212 = vadd.f32 %v210, %v211
      %v213 = vrot.slane %v212, 2
      %v214 = vadd.f32 %v212, %v213
      %v215 = vrot.slane %v214, 1
      %v216 = vadd.f32 %v214, %v215
      %v217 = vadd.f32 %v123, %v139
      %v218 = vrot.slane %v217, 4
      %v219 = vadd.f32 %v217, %v218
      %v220 = vrot.slane %v219, 2
      %v221 = vadd.f32 %v219, %v220
      %v222 = vrot.slane %v221, 1
      %v223 = vadd.f32 %v221, %v222
      %v224 = vadd.f32 %v124, %v140
      %v225 = vrot.slane %v224, 4
      %v226 = vadd.f32 %v224, %v225
      %v227 = vrot.slane %v226, 2
      %v228 = vadd.f32 %v226, %v227
      %v229 = vrot.slane %v228, 1
      %v230 = vadd.f32 %v228, %v229
      %v231 = vadd.f32 %v125, %v141
      %v232 = vrot.slane %v231, 4
      %v233 = vadd.f32 %v231, %v232
      %v234 = vrot.slane %v233, 2
      %v235 = vadd.f32 %v233, %v234
      %v236 = vrot.slane %v235, 1
      %v237 = vadd.f32 %v235, %v236
      %v238 = vadd.f32 %v126, %v142
      %v239 = vrot.slane %v238, 4
      %v240 = vadd.f32 %v238, %v239
      %v241 = vrot.slane %v240, 2
      %v242 = vadd.f32 %v240, %v241
      %v243 = vrot.slane %v242, 1
      %v244 = vadd.f32 %v242, %v243
      %v245 = vadd.f32 %v127, %v143
      %v246 = vrot.slane %v245, 4
      %v247 = vadd.f32 %v245, %v246
      %v248 = vrot.slane %v247, 2
      %v249 = vadd.f32 %v247, %v248
      %v250 = vrot.slane %v249, 1
      %v251 = vadd.f32 %v249, %v250
      %v252 = vadd.f32 %v128, %v144
      %v253 = vrot.slane %v252, 4
      %v254 = vadd.f32 %v252, %v253
      %v255 = vrot.slane %v254, 2
      %v256 = vadd.f32 %v254, %v255
      %v257 = vrot.slane %v256, 1
      %v258 = vadd.f32 %v256, %v257
      %v259 = vadd.f32 %v129, %v145
      %v260 = vrot.slane %v259, 4
      %v261 = vadd.f32 %v259, %v260
      %v262 = vrot.slane %v261, 2
      %v263 = vadd.f32 %v261, %v262
      %v264 = vrot.slane %v263, 1
      %v265 = vadd.f32 %v263, %v264
      %v266 = vadd.f32 %v130, %v146
      %v267 = vrot.slane %v266, 4
      %v268 = vadd.f32 %v266, %v267
      %v269 = vrot.slane %v268, 2
      %v270 = vadd.f32 %v268, %v269
      %v271 = vrot.slane %v270, 1
      %v272 = vadd.f32 %v270, %v271
      %v273 = vadd.f32 %v131, %v147
      %v274 = vrot.slane %v273, 4
      %v275 = vadd.f32 %v273, %v274
      %v276 = vrot.slane %v275, 2
      %v277 = vadd.f32 %v275, %v276
      %v278 = vrot.slane %v277, 1
      %v279 = vadd.f32 %v277, %v278
      %v280 = vadd.f32 %v132, %v148
      %v281 = vrot.slane %v280, 4
      %v282 = vadd.f32 %v280, %v281
      %v283 = vrot.slane %v282, 2
      %v284 = vadd.f32 %v282, %v283
      %v285 = vrot.slane %v284, 1
      %v286 = vadd.f32 %v284, %v285
      %v287 = vadd.f32 %v133, %v149
      %v288 = vrot.slane %v287, 4
      %v289 = vadd.f32 %v287, %v288
      %v290 = vrot.slane %v289, 2
      %v291 = vadd.f32 %v289, %v290
      %v292 = vrot.slane %v291, 1
      %v293 = vadd.f32 %v291, %v292
      %v294 = vadd.f32 %v150, %v166
      %v295 = vrot.slane %v294, 4
      %v296 = vadd.f32 %v294, %v295
      %v297 = vrot.slane %v296, 2
      %v298 = vadd.f32 %v296, %v297
      %v299 = vrot.slane %v298, 1
      %v300 = vadd.f32 %v298, %v299
      %v301 = vadd.f32 %v151, %v167
      %v302 = vrot.slane %v301, 4
      %v303 = vadd.f32 %v301, %v302
      %v304 = vrot.slane %v303, 2
      %v305 = vadd.f32 %v303, %v304
      %v306 = vrot.slane %v305, 1
      %v307 = vadd.f32 %v305, %v306
      %v308 = vadd.f32 %v152, %v168
      %v309 = vrot.slane %v308, 4
      %v310 = vadd.f32 %v308, %v309
      %v311 = vrot.slane %v310, 2
      %v312 = vadd.f32 %v310, %v311
      %v313 = vrot.slane %v312, 1
      %v314 = vadd.f32 %v312, %v313
      %v315 = vadd.f32 %v153, %v169
      %v316 = vrot.slane %v315, 4
      %v317 = vadd.f32 %v315, %v316
      %v318 = vrot.slane %v317, 2
      %v319 = vadd.f32 %v317, %v318
      %v320 = vrot.slane %v319, 1
      %v321 = vadd.f32 %v319, %v320
      %v322 = vadd.f32 %v154, %v170
      %v323 = vrot.slane %v322, 4
      %v324 = vadd.f32 %v322, %v323
      %v325 = vrot.slane %v324, 2
      %v326 = vadd.f32 %v324, %v325
      %v327 = vrot.slane %v326, 1
      %v328 = vadd.f32 %v326, %v327
      %v329 = vadd.f32 %v155, %v171
      %v330 = vrot.slane %v329, 4
      %v331 = vadd.f32 %v329, %v330
      %v332 = vrot.slane %v331, 2
      %v333 = vadd.f32 %v331, %v332
      %v334 = vrot.slane %v333, 1
      %v335 = vadd.f32 %v333, %v334
      %v336 = vadd.f32 %v156, %v172
      %v337 = vrot.slane %v336, 4
      %v338 = vadd.f32 %v336, %v337
      %v339 = vrot.slane %v338, 2
      %v340 = vadd.f32 %v338, %v339
      %v341 = vrot.slane %v340, 1
      %v342 = vadd.f32 %v340, %v341
      %v343 = vadd.f32 %v157, %v173
      %v344 = vrot.slane %v343, 4
      %v345 = vadd.f32 %v343, %v344
      %v346 = vrot.slane %v345, 2
      %v347 = vadd.f32 %v345, %v346
      %v348 = vrot.slane %v347, 1
      %v349 = vadd.f32 %v347, %v348
      %v350 = vadd.f32 %v158, %v174
      %v351 = vrot.slane %v350, 4
      %v352 = vadd.f32 %v350, %v351
      %v353 = vrot.slane %v352, 2
      %v354 = vadd.f32 %v352, %v353
      %v355 = vrot.slane %v354, 1
      %v356 = vadd.f32 %v354, %v355
      %v357 = vadd.f32 %v159, %v175
      %v358 = vrot.slane %v357, 4
      %v359 = vadd.f32 %v357, %v358
      %v360 = vrot.slane %v359, 2
      %v361 = vadd.f32 %v359, %v360
      %v362 = vrot.slane %v361, 1
      %v363 = vadd.f32 %v361, %v362
      %v364 = vadd.f32 %v160, %v176
      %v365 = vrot.slane %v364, 4
      %v366 = vadd.f32 %v364, %v365
      %v367 = vrot.slane %v366, 2
      %v368 = vadd.f32 %v366, %v367
      %v369 = vrot.slane %v368, 1
      %v370 = vadd.f32 %v368, %v369
      %v371 = vadd.f32 %v161, %v177
      %v372 = vrot.slane %v371, 4
      %v373 = vadd.f32 %v371, %v372
      %v374 = vrot.slane %v373, 2
      %v375 = vadd.f32 %v373, %v374
      %v376 = vrot.slane %v375, 1
      %v377 = vadd.f32 %v375, %v376
      %v378 = vadd.f32 %v162, %v178
      %v379 = vrot.slane %v378, 4
      %v380 = vadd.f32 %v378, %v379
      %v381 = vrot.slane %v380, 2
      %v382 = vadd.f32 %v380, %v381
      %v383 = vrot.slane %v382, 1
      %v384 = vadd.f32 %v382, %v383
      %v385 = vadd.f32 %v163, %v179
      %v386 = vrot.slane %v385, 4
      %v387 = vadd.f32 %v385, %v386
      %v388 = vrot.slane %v387, 2
      %v389 = vadd.f32 %v387, %v388
      %v390 = vrot.slane %v389, 1
      %v391 = vadd.f32 %v389, %v390
      %v392 = vadd.f32 %v164, %v180
      %v393 = vrot.slane %v392, 4
      %v394 = vadd.f32 %v392, %v393
      %v395 = vrot.slane %v394, 2
      %v396 = vadd.f32 %v394, %v395
      %v397 = vrot.slane %v396, 1
      %v398 = vadd.f32 %v396, %v397
      %v399 = vadd.f32 %v165, %v181
      %v400 = vrot.slane %v399, 4
      %v401 = vadd.f32 %v399, %v400
      %v402 = vrot.slane %v401, 2
      %v403 = vadd.f32 %v401, %v402
      %v404 = vrot.slane %v403, 1
      %v405 = vadd.f32 %v403, %v404
      %v406 = vadd.f32 %v48, %v188
      %v407 = vadd.f32 %v49, %v195
      %v408 = vadd.f32 %v50, %v202
      %v409 = vadd.f32 %v51, %v209
      %v410 = vadd.f32 %v52, %v216
      %v411 = vadd.f32 %v53, %v223
      %v412 = vadd.f32 %v54, %v230
      %v413 = vadd.f32 %v55, %v237
      %v414 = vadd.f32 %v56, %v244
      %v415 = vadd.f32 %v57, %v251
      %v416 = vadd.f32 %v58, %v258
      %v417 = vadd.f32 %v59, %v265
      %v418 = vadd.f32 %v60, %v272
      %v419 = vadd.f32 %v61, %v279
      %v420 = vadd.f32 %v62, %v286
      %v421 = vadd.f32 %v63, %v293
      %v422 = vadd.f32 %v64, %v300
      %v423 = vadd.f32 %v65, %v307
      %v424 = vadd.f32 %v66, %v314
      %v425 = vadd.f32 %v67, %v321
      %v426 = vadd.f32 %v68, %v328
      %v427 = vadd.f32 %v69, %v335
      %v428 = vadd.f32 %v70, %v342
      %v429 = vadd.f32 %v71, %v349
      %v430 = vadd.f32 %v72, %v356
      %v431 = vadd.f32 %v73, %v363
      %v432 = vadd.f32 %v74, %v370
      %v433 = vadd.f32 %v75, %v377
      %v434 = vadd.f32 %v76, %v384
      %v435 = vadd.f32 %v77, %v391
      %v436 = vadd.f32 %v78, %v398
      %v437 = vadd.f32 %v79, %v405
    $region38: #{tpu_custom_call.1} parent=1 // loop_footer
      %s47 = sadd.s32 1, %s43
    $region39: #{tpu_custom_call.1} parent=1 // loop_footer_branch
      %42 = sbr.rel target = $region35
    $region40: #{tpu_custom_call.1} parent=1 // loop_exit
      _
    %v438 = vld [vmem:[%s0 + $0x180] sm:$0x11]
    %v439 = vld [vmem:[%s0 + $0x188] sm:$0x11]
    %v440 = vld [vmem:[%s0 + $0x190] sm:$0x11]
    %v441 = vld [vmem:[%s0 + $0x198] sm:$0x11]
    %v442 = vld [vmem:[%s0 + $0x1a0] sm:$0x11]
    %v443 = vld [vmem:[%s0 + $0x1a8] sm:$0x11]
    %v444 = vld [vmem:[%s0 + $0x1b0] sm:$0x11]
    %v445 = vld [vmem:[%s0 + $0x1b8] sm:$0x11]
    %v446 = vld [vmem:[%s0 + $0x340] sm:$0x11]
    %v447 = vld [vmem:[%s0 + $0x348] sm:$0x11]
    %v448 = vld [vmem:[%s0 + $0x350] sm:$0x11]
    %v449 = vld [vmem:[%s0 + $0x358] sm:$0x11]
    %v450 = vld [vmem:[%s0 + $0x360] sm:$0x11]
    %v451 = vld [vmem:[%s0 + $0x368] sm:$0x11]
    %v452 = vld [vmem:[%s0 + $0x370] sm:$0x11]
    %v453 = vld [vmem:[%s0 + $0x378] sm:$0x11]
    %v454 = vunpack.c.l.bf16 %v438
    %v455 = vunpack.c.h.bf16 %v438
    %v456 = vunpack.c.l.bf16 %v439
    %v457 = vunpack.c.h.bf16 %v439
    %v458 = vunpack.c.l.bf16 %v440
    %v459 = vunpack.c.h.bf16 %v440
    %v460 = vunpack.c.l.bf16 %v441
    %v461 = vunpack.c.h.bf16 %v441
    %v462 = vunpack.c.l.bf16 %v442
    %v463 = vunpack.c.h.bf16 %v442
    %v464 = vunpack.c.l.bf16 %v443
    %v465 = vunpack.c.h.bf16 %v443
    %v466 = vunpack.c.l.bf16 %v444
    %v467 = vunpack.c.h.bf16 %v444
    %v468 = vunpack.c.l.bf16 %v445
    %v469 = vunpack.c.h.bf16 %v445
    %v470 = vunpack.c.l.bf16 %v446
    %v471 = vunpack.c.h.bf16 %v446
    %v472 = vunpack.c.l.bf16 %v447
    %v473 = vunpack.c.h.bf16 %v447
    %v474 = vunpack.c.l.bf16 %v448
    %v475 = vunpack.c.h.bf16 %v448
    %v476 = vunpack.c.l.bf16 %v449
    %v477 = vunpack.c.h.bf16 %v449
    %v478 = vunpack.c.l.bf16 %v450
    %v479 = vunpack.c.h.bf16 %v450
    %v480 = vunpack.c.l.bf16 %v451
    %v481 = vunpack.c.h.bf16 %v451
    %v482 = vunpack.c.l.bf16 %v452
    %v483 = vunpack.c.h.bf16 %v452
    %v484 = vunpack.c.l.bf16 %v453
    %v485 = vunpack.c.h.bf16 %v453
    %v486 = vadd.f32 %v454, 0.0
    %v487 = vadd.f32 %v455, 0.0
    %v488 = vadd.f32 %v456, 0.0
    %v489 = vadd.f32 %v457, 0.0
    %v490 = vadd.f32 %v458, 0.0
    %v491 = vadd.f32 %v459, 0.0
    %v492 = vadd.f32 %v460, 0.0
    %v493 = vadd.f32 %v461, 0.0
    %v494 = vadd.f32 %v462, 0.0
    %v495 = vadd.f32 %v463, 0.0
    %v496 = vadd.f32 %v464, 0.0
    %v497 = vadd.f32 %v465, 0.0
    %v498 = vadd.f32 %v466, 0.0
    %v499 = vadd.f32 %v467, 0.0
    %v500 = vadd.f32 %v468, 0.0
    %v501 = vadd.f32 %v469, 0.0
    %v502 = vadd.f32 %v470, 0.0
    %v503 = vadd.f32 %v471, 0.0
    %v504 = vadd.f32 %v472, 0.0
    %v505 = vadd.f32 %v473, 0.0
    %v506 = vadd.f32 %v474, 0.0
    %v507 = vadd.f32 %v475, 0.0
    %v508 = vadd.f32 %v476, 0.0
    %v509 = vadd.f32 %v477, 0.0
    %v510 = vadd.f32 %v478, 0.0
    %v511 = vadd.f32 %v479, 0.0
    %v512 = vadd.f32 %v480, 0.0
    %v513 = vadd.f32 %v481, 0.0
    %v514 = vadd.f32 %v482, 0.0
    %v515 = vadd.f32 %v483, 0.0
    %v516 = vadd.f32 %v484, 0.0
    %v517 = vadd.f32 %v485, 0.0
    %v518 = vadd.f32 %v48, %v486
    %v519 = vadd.f32 %v49, %v487
    %v520 = vadd.f32 %v50, %v488
    %v521 = vadd.f32 %v51, %v489
    %v522 = vadd.f32 %v52, %v490
    %v523 = vadd.f32 %v53, %v491
    %v524 = vadd.f32 %v54, %v492
    %v525 = vadd.f32 %v55, %v493
    %v526 = vadd.f32 %v56, %v494
    %v527 = vadd.f32 %v57, %v495
    %v528 = vadd.f32 %v58, %v496
    %v529 = vadd.f32 %v59, %v497
    %v530 = vadd.f32 %v60, %v498
    %v531 = vadd.f32 %v61, %v499
    %v532 = vadd.f32 %v62, %v500
    %v533 = vadd.f32 %v63, %v501
    %v534 = vadd.f32 %v64, %v502
    %v535 = vadd.f32 %v65, %v503
    %v536 = vadd.f32 %v66, %v504
    %v537 = vadd.f32 %v67, %v505
    %v538 = vadd.f32 %v68, %v506
    %v539 = vadd.f32 %v69, %v507
    %v540 = vadd.f32 %v70, %v508
    %v541 = vadd.f32 %v71, %v509
    %v542 = vadd.f32 %v72, %v510
    %v543 = vadd.f32 %v73, %v511
    %v544 = vadd.f32 %v74, %v512
    %v545 = vadd.f32 %v75, %v513
    %v546 = vadd.f32 %v76, %v514
    %v547 = vadd.f32 %v77, %v515
    %v548 = vadd.f32 %v78, %v516
    %v549 = vadd.f32 %v79, %v517
    %v550 = vld [vmem:[#allocation3] sm:$0xff]
    %v551 = vld [vmem:[#allocation3 + $0x8] sm:$0xff]
    %v552 = vld [vmem:[#allocation3 + $0x10] sm:$0xff]
    %v553 = vld [vmem:[#allocation3 + $0x18] sm:$0xff]
    %v554 = vld [vmem:[#allocation3 + $0x20] sm:$0xff]
    %v555 = vld [vmem:[#allocation3 + $0x28] sm:$0xff]
    %v556 = vld [vmem:[#allocation3 + $0x30] sm:$0xff]
    %v557 = vld [vmem:[#allocation3 + $0x38] sm:$0xff]
    %v558 = vld [vmem:[#allocation3 + $0x40] sm:$0xff]
    %v559 = vld [vmem:[#allocation3 + $0x48] sm:$0xff]
    %v560 = vld [vmem:[#allocation3 + $0x50] sm:$0xff]
    %v561 = vld [vmem:[#allocation3 + $0x58] sm:$0xff]
    %v562 = vld [vmem:[#allocation3 + $0x60] sm:$0xff]
    %v563 = vld [vmem:[#allocation3 + $0x68] sm:$0xff]
    %v564 = vld [vmem:[#allocation3 + $0x70] sm:$0xff]
    %v565 = vld [vmem:[#allocation3 + $0x78] sm:$0xff]
    %v566 = vld [vmem:[#allocation3 + $0x80] sm:$0xff]
    %v567 = vld [vmem:[#allocation3 + $0x88] sm:$0xff]
    %v568 = vld [vmem:[#allocation3 + $0x90] sm:$0xff]
    %v569 = vld [vmem:[#allocation3 + $0x98] sm:$0xff]
    %v570 = vld [vmem:[#allocation3 + $0xa0] sm:$0xff]
    %v571 = vld [vmem:[#allocation3 + $0xa8] sm:$0xff]
    %v572 = vld [vmem:[#allocation3 + $0xb0] sm:$0xff]
    %v573 = vld [vmem:[#allocation3 + $0xb8] sm:$0xff]
    %v574 = vld [vmem:[#allocation3 + $0xc0] sm:$0xff]
    %v575 = vld [vmem:[#allocation3 + $0xc8] sm:$0xff]
    %v576 = vld [vmem:[#allocation3 + $0xd0] sm:$0xff]
    %v577 = vld [vmem:[#allocation3 + $0xd8] sm:$0xff]
    %v578 = vld [vmem:[#allocation3 + $0xe0] sm:$0xff]
    %v579 = vld [vmem:[#allocation3 + $0xe8] sm:$0xff]
    %v580 = vld [vmem:[#allocation3 + $0xf0] sm:$0xff]
    %v581 = vld [vmem:[#allocation3 + $0xf8] sm:$0xff]
    %v582 = vld [vmem:[#allocation3 + $0x100] sm:$0xff]
    %v583 = vld [vmem:[#allocation3 + $0x108] sm:$0xff]
    %v584 = vld [vmem:[#allocation3 + $0x110] sm:$0xff]
    %v585 = vld [vmem:[#allocation3 + $0x118] sm:$0xff]
    %v586 = vld [vmem:[#allocation3 + $0x120] sm:$0xff]
    %v587 = vld [vmem:[#allocation3 + $0x128] sm:$0xff]
    %v588 = vld [vmem:[#allocation3 + $0x130] sm:$0xff]
    %v589 = vld [vmem:[#allocation3 + $0x138] sm:$0xff]
    %v590 = vld [vmem:[#allocation3 + $0x140] sm:$0xff]
    %v591 = vld [vmem:[#allocation3 + $0x148] sm:$0xff]
    %v592 = vld [vmem:[#allocation3 + $0x150] sm:$0xff]
    %v593 = vld [vmem:[#allocation3 + $0x158] sm:$0xff]
    %v594 = vld [vmem:[#allocation3 + $0x160] sm:$0xff]
    %v595 = vld [vmem:[#allocation3 + $0x168] sm:$0xff]
    %v596 = vld [vmem:[#allocation3 + $0x170] sm:$0xff]
    %v597 = vld [vmem:[#allocation3 + $0x178] sm:$0xff]
    %v598 = vld [vmem:[#allocation3 + $0x180] sm:$0xff]
    %v599 = vld [vmem:[#allocation3 + $0x188] sm:$0xff]
    %v600 = vld [vmem:[#allocation3 + $0x190] sm:$0xff]
    %v601 = vld [vmem:[#allocation3 + $0x198] sm:$0xff]
    %v602 = vld [vmem:[#allocation3 + $0x1a0] sm:$0xff]
    %v603 = vld [vmem:[#allocation3 + $0x1a8] sm:$0xff]
    %v604 = vld [vmem:[#allocation3 + $0x1b0] sm:$0xff]
    %v605 = vld [vmem:[#allocation3 + $0x1b8] sm:$0xff]
    %v606 = vld [vmem:[#allocation3 + $0x1c0] sm:$0xff]
    %v607 = vld [vmem:[#allocation3 + $0x1c8] sm:$0xff]
    %v608 = vld [vmem:[#allocation3 + $0x1d0] sm:$0xff]
    %v609 = vld [vmem:[#allocation3 + $0x1d8] sm:$0xff]
    %v610 = vld [vmem:[#allocation3 + $0x1e0] sm:$0xff]
    %v611 = vld [vmem:[#allocation3 + $0x1e8] sm:$0xff]
    %v612 = vld [vmem:[#allocation3 + $0x1f0] sm:$0xff]
    %v613 = vld [vmem:[#allocation3 + $0x1f8] sm:$0xff]
    %v614 = vld [vmem:[#allocation3 + $0x200] sm:$0xff]
    %v615 = vld [vmem:[#allocation3 + $0x208] sm:$0xff]
    %v616 = vld [vmem:[#allocation3 + $0x210] sm:$0xff]
    %v617 = vld [vmem:[#allocation3 + $0x218] sm:$0xff]
    %v618 = vld [vmem:[#allocation3 + $0x220] sm:$0xff]
    %v619 = vld [vmem:[#allocation3 + $0x228] sm:$0xff]
    %v620 = vld [vmem:[#allocation3 + $0x230] sm:$0xff]
    %v621 = vld [vmem:[#allocation3 + $0x238] sm:$0xff]
    %v622 = vld [vmem:[#allocation3 + $0x240] sm:$0xff]
    %v623 = vld [vmem:[#allocation3 + $0x248] sm:$0xff]
    %v624 = vld [vmem:[#allocation3 + $0x250] sm:$0xff]
    %v625 = vld [vmem:[#allocation3 + $0x258] sm:$0xff]
    %v626 = vld [vmem:[#allocation3 + $0x260] sm:$0xff]
    %v627 = vld [vmem:[#allocation3 + $0x268] sm:$0xff]
    %v628 = vld [vmem:[#allocation3 + $0x270] sm:$0xff]
    %v629 = vld [vmem:[#allocation3 + $0x278] sm:$0xff]
    %v630 = vld [vmem:[#allocation3 + $0x280] sm:$0xff]
    %v631 = vld [vmem:[#allocation3 + $0x288] sm:$0xff]
    %v632 = vld [vmem:[#allocation3 + $0x290] sm:$0xff]
    %v633 = vld [vmem:[#allocation3 + $0x298] sm:$0xff]
    %v634 = vld [vmem:[#allocation3 + $0x2a0] sm:$0xff]
    %v635 = vld [vmem:[#allocation3 + $0x2a8] sm:$0xff]
    %v636 = vld [vmem:[#allocation3 + $0x2b0] sm:$0xff]
    %v637 = vld [vmem:[#allocation3 + $0x2b8] sm:$0xff]
    %v638 = vld [vmem:[#allocation3 + $0x2c0] sm:$0xff]
    %v639 = vld [vmem:[#allocation3 + $0x2c8] sm:$0xff]
    %v640 = vld [vmem:[#allocation3 + $0x2d0] sm:$0xff]
    %v641 = vld [vmem:[#allocation3 + $0x2d8] sm:$0xff]
    %v642 = vld [vmem:[#allocation3 + $0x2e0] sm:$0xff]
    %v643 = vld [vmem:[#allocation3 + $0x2e8] sm:$0xff]
    %v644 = vld [vmem:[#allocation3 + $0x2f0] sm:$0xff]
    %v645 = vld [vmem:[#allocation3 + $0x2f8] sm:$0xff]
    %v646 = vld [vmem:[#allocation3 + $0x300] sm:$0xff]
    %v647 = vld [vmem:[#allocation3 + $0x308] sm:$0xff]
    %v648 = vld [vmem:[#allocation3 + $0x310] sm:$0xff]
    %v649 = vld [vmem:[#allocation3 + $0x318] sm:$0xff]
    %v650 = vld [vmem:[#allocation3 + $0x320] sm:$0xff]
    %v651 = vld [vmem:[#allocation3 + $0x328] sm:$0xff]
    %v652 = vld [vmem:[#allocation3 + $0x330] sm:$0xff]
    %v653 = vld [vmem:[#allocation3 + $0x338] sm:$0xff]
    %v654 = vld [vmem:[#allocation3 + $0x340] sm:$0xff]
    %v655 = vld [vmem:[#allocation3 + $0x348] sm:$0xff]
    %v656 = vld [vmem:[#allocation3 + $0x350] sm:$0xff]
    %v657 = vld [vmem:[#allocation3 + $0x358] sm:$0xff]
    %v658 = vld [vmem:[#allocation3 + $0x360] sm:$0xff]
    %v659 = vld [vmem:[#allocation3 + $0x368] sm:$0xff]
    %v660 = vld [vmem:[#allocation3 + $0x370] sm:$0xff]
    %v661 = vld [vmem:[#allocation3 + $0x378] sm:$0xff]
    %v662 = vld [vmem:[#allocation3 + $0x380] sm:$0xff]
    %v663 = vld [vmem:[#allocation3 + $0x388] sm:$0xff]
    %v664 = vld [vmem:[#allocation3 + $0x390] sm:$0xff]
    %v665 = vld [vmem:[#allocation3 + $0x398] sm:$0xff]
    %v666 = vld [vmem:[#allocation3 + $0x3a0] sm:$0xff]
    %v667 = vld [vmem:[#allocation3 + $0x3a8] sm:$0xff]
    %v668 = vld [vmem:[#allocation3 + $0x3b0] sm:$0xff]
    %v669 = vld [vmem:[#allocation3 + $0x3b8] sm:$0xff]
    %v670 = vld [vmem:[#allocation3 + $0x3c0] sm:$0xff]
    %v671 = vld [vmem:[#allocation3 + $0x3c8] sm:$0xff]
    %v672 = vld [vmem:[#allocation3 + $0x3d0] sm:$0xff]
    %v673 = vld [vmem:[#allocation3 + $0x3d8] sm:$0xff]
    %v674 = vld [vmem:[#allocation3 + $0x3e0] sm:$0xff]
    %v675 = vld [vmem:[#allocation3 + $0x3e8] sm:$0xff]
    %v676 = vld [vmem:[#allocation3 + $0x3f0] sm:$0xff]
    %v677 = vld [vmem:[#allocation3 + $0x3f8] sm:$0xff]
    %v678 = vld [vmem:[#allocation3 + $0x400] sm:$0xff]
    %v679 = vld [vmem:[#allocation3 + $0x408] sm:$0xff]
    %v680 = vld [vmem:[#allocation3 + $0x410] sm:$0xff]
    %v681 = vld [vmem:[#allocation3 + $0x418] sm:$0xff]
    %v682 = vld [vmem:[#allocation3 + $0x420] sm:$0xff]
    %v683 = vld [vmem:[#allocation3 + $0x428] sm:$0xff]
    %v684 = vld [vmem:[#allocation3 + $0x430] sm:$0xff]
    %v685 = vld [vmem:[#allocation3 + $0x438] sm:$0xff]
    %v686 = vld [vmem:[#allocation3 + $0x440] sm:$0xff]
    %v687 = vld [vmem:[#allocation3 + $0x448] sm:$0xff]
    %v688 = vld [vmem:[#allocation3 + $0x450] sm:$0xff]
    %v689 = vld [vmem:[#allocation3 + $0x458] sm:$0xff]
    %v690 = vld [vmem:[#allocation3 + $0x460] sm:$0xff]
    %v691 = vld [vmem:[#allocation3 + $0x468] sm:$0xff]
    %v692 = vld [vmem:[#allocation3 + $0x470] sm:$0xff]
    %v693 = vld [vmem:[#allocation3 + $0x478] sm:$0xff]
    %v694 = vld [vmem:[#allocation3 + $0x480] sm:$0xff]
    %v695 = vld [vmem:[#allocation3 + $0x488] sm:$0xff]
    %v696 = vld [vmem:[#allocation3 + $0x490] sm:$0xff]
    %v697 = vld [vmem:[#allocation3 + $0x498] sm:$0xff]
    %v698 = vld [vmem:[#allocation3 + $0x4a0] sm:$0xff]
    %v699 = vld [vmem:[#allocation3 + $0x4a8] sm:$0xff]
    %v700 = vld [vmem:[#allocation3 + $0x4b0] sm:$0xff]
    %v701 = vld [vmem:[#allocation3 + $0x4b8] sm:$0xff]
    %v702 = vld [vmem:[#allocation3 + $0x4c0] sm:$0xff]
    %v703 = vld [vmem:[#allocation3 + $0x4c8] sm:$0xff]
    %v704 = vld [vmem:[#allocation3 + $0x4d0] sm:$0xff]
    %v705 = vld [vmem:[#allocation3 + $0x4d8] sm:$0xff]
    %v706 = vld [vmem:[#allocation3 + $0x4e0] sm:$0xff]
    %v707 = vld [vmem:[#allocation3 + $0x4e8] sm:$0xff]
    %v708 = vld [vmem:[#allocation3 + $0x4f0] sm:$0xff]
    %v709 = vld [vmem:[#allocation3 + $0x4f8] sm:$0xff]
    %v710 = vld [vmem:[#allocation3 + $0x500] sm:$0xff]
    %v711 = vld [vmem:[#allocation3 + $0x508] sm:$0xff]
    %v712 = vld [vmem:[#allocation3 + $0x510] sm:$0xff]
    %v713 = vld [vmem:[#allocation3 + $0x518] sm:$0xff]
    %v714 = vld [vmem:[#allocation3 + $0x520] sm:$0xff]
    %v715 = vld [vmem:[#allocation3 + $0x528] sm:$0xff]
    %v716 = vld [vmem:[#allocation3 + $0x530] sm:$0xff]
    %v717 = vld [vmem:[#allocation3 + $0x538] sm:$0xff]
    %v718 = vld [vmem:[#allocation3 + $0x540] sm:$0xff]
    %v719 = vld [vmem:[#allocation3 + $0x548] sm:$0xff]
    %v720 = vld [vmem:[#allocation3 + $0x550] sm:$0xff]
    %v721 = vld [vmem:[#allocation3 + $0x558] sm:$0xff]
    %v722 = vld [vmem:[#allocation3 + $0x560] sm:$0xff]
    %v723 = vld [vmem:[#allocation3 + $0x568] sm:$0xff]
    %v724 = vld [vmem:[#allocation3 + $0x570] sm:$0xff]
    %v725 = vld [vmem:[#allocation3 + $0x578] sm:$0xff]
    %v726 = vld [vmem:[#allocation3 + $0x580] sm:$0xff]
    %v727 = vld [vmem:[#allocation3 + $0x588] sm:$0xff]
    %v728 = vld [vmem:[#allocation3 + $0x590] sm:$0xff]
    %v729 = vld [vmem:[#allocation3 + $0x598] sm:$0xff]
    %v730 = vld [vmem:[#allocation3 + $0x5a0] sm:$0xff]
    %v731 = vld [vmem:[#allocation3 + $0x5a8] sm:$0xff]
    %v732 = vld [vmem:[#allocation3 + $0x5b0] sm:$0xff]
    %v733 = vld [vmem:[#allocation3 + $0x5b8] sm:$0xff]
    %v734 = vld [vmem:[#allocation3 + $0x5c0] sm:$0xff]
    %v735 = vld [vmem:[#allocation3 + $0x5c8] sm:$0xff]
    %v736 = vld [vmem:[#allocation3 + $0x5d0] sm:$0xff]
    %v737 = vld [vmem:[#allocation3 + $0x5d8] sm:$0xff]
    %v738 = vld [vmem:[#allocation3 + $0x5e0] sm:$0xff]
    %v739 = vld [vmem:[#allocation3 + $0x5e8] sm:$0xff]
    %v740 = vld [vmem:[#allocation3 + $0x5f0] sm:$0xff]
    %v741 = vld [vmem:[#allocation3 + $0x5f8] sm:$0xff]
    %v742 = vld [vmem:[#allocation3 + $0x600] sm:$0xff]
    %v743 = vld [vmem:[#allocation3 + $0x608] sm:$0xff]
    %v744 = vld [vmem:[#allocation3 + $0x610] sm:$0xff]
    %v745 = vld [vmem:[#allocation3 + $0x618] sm:$0xff]
    %v746 = vld [vmem:[#allocation3 + $0x620] sm:$0xff]
    %v747 = vld [vmem:[#allocation3 + $0x628] sm:$0xff]
    %v748 = vld [vmem:[#allocation3 + $0x630] sm:$0xff]
    %v749 = vld [vmem:[#allocation3 + $0x638] sm:$0xff]
    %v750 = vld [vmem:[#allocation3 + $0x640] sm:$0xff]
    %v751 = vld [vmem:[#allocation3 + $0x648] sm:$0xff]
    %v752 = vld [vmem:[#allocation3 + $0x650] sm:$0xff]
    %v753 = vld [vmem:[#allocation3 + $0x658] sm:$0xff]
    %v754 = vld [vmem:[#allocation3 + $0x660] sm:$0xff]
    %v755 = vld [vmem:[#allocation3 + $0x668] sm:$0xff]
    %v756 = vld [vmem:[#allocation3 + $0x670] sm:$0xff]
    %v757 = vld [vmem:[#allocation3 + $0x678] sm:$0xff]
    %v758 = vld [vmem:[#allocation3 + $0x680] sm:$0xff]
    %v759 = vld [vmem:[#allocation3 + $0x688] sm:$0xff]
    %v760 = vld [vmem:[#allocation3 + $0x690] sm:$0xff]
    %v761 = vld [vmem:[#allocation3 + $0x698] sm:$0xff]
    %v762 = vld [vmem:[#allocation3 + $0x6a0] sm:$0xff]
    %v763 = vld [vmem:[#allocation3 + $0x6a8] sm:$0xff]
    %v764 = vld [vmem:[#allocation3 + $0x6b0] sm:$0xff]
    %v765 = vld [vmem:[#allocation3 + $0x6b8] sm:$0xff]
    %v766 = vld [vmem:[#allocation3 + $0x6c0] sm:$0xff]
    %v767 = vld [vmem:[#allocation3 + $0x6c8] sm:$0xff]
    %v768 = vld [vmem:[#allocation3 + $0x6d0] sm:$0xff]
    %v769 = vld [vmem:[#allocation3 + $0x6d8] sm:$0xff]
    %v770 = vld [vmem:[#allocation3 + $0x6e0] sm:$0xff]
    %v771 = vld [vmem:[#allocation3 + $0x6e8] sm:$0xff]
    %v772 = vld [vmem:[#allocation3 + $0x6f0] sm:$0xff]
    %v773 = vld [vmem:[#allocation3 + $0x6f8] sm:$0xff]
    %v774 = vld [vmem:[#allocation3 + $0x700] sm:$0xff]
    %v775 = vld [vmem:[#allocation3 + $0x708] sm:$0xff]
    %v776 = vld [vmem:[#allocation3 + $0x710] sm:$0xff]
    %v777 = vld [vmem:[#allocation3 + $0x718] sm:$0xff]
    %v778 = vld [vmem:[#allocation3 + $0x720] sm:$0xff]
    %v779 = vld [vmem:[#allocation3 + $0x728] sm:$0xff]
    %v780 = vld [vmem:[#allocation3 + $0x730] sm:$0xff]
    %v781 = vld [vmem:[#allocation3 + $0x738] sm:$0xff]
    %v782 = vld [vmem:[#allocation3 + $0x740] sm:$0xff]
    %v783 = vld [vmem:[#allocation3 + $0x748] sm:$0xff]
    %v784 = vld [vmem:[#allocation3 + $0x750] sm:$0xff]
    %v785 = vld [vmem:[#allocation3 + $0x758] sm:$0xff]
    %v786 = vld [vmem:[#allocation3 + $0x760] sm:$0xff]
    %v787 = vld [vmem:[#allocation3 + $0x768] sm:$0xff]
    %v788 = vld [vmem:[#allocation3 + $0x770] sm:$0xff]
    %v789 = vld [vmem:[#allocation3 + $0x778] sm:$0xff]
    %v790 = vld [vmem:[#allocation3 + $0x780] sm:$0xff]
    %v791 = vld [vmem:[#allocation3 + $0x788] sm:$0xff]
    %v792 = vld [vmem:[#allocation3 + $0x790] sm:$0xff]
    %v793 = vld [vmem:[#allocation3 + $0x798] sm:$0xff]
    %v794 = vld [vmem:[#allocation3 + $0x7a0] sm:$0xff]
    %v795 = vld [vmem:[#allocation3 + $0x7a8] sm:$0xff]
    %v796 = vld [vmem:[#allocation3 + $0x7b0] sm:$0xff]
    %v797 = vld [vmem:[#allocation3 + $0x7b8] sm:$0xff]
    %v798 = vld [vmem:[#allocation3 + $0x7c0] sm:$0xff]
    %v799 = vld [vmem:[#allocation3 + $0x7c8] sm:$0xff]
    %v800 = vld [vmem:[#allocation3 + $0x7d0] sm:$0xff]
    %v801 = vld [vmem:[#allocation3 + $0x7d8] sm:$0xff]
    %v802 = vld [vmem:[#allocation3 + $0x7e0] sm:$0xff]
    %v803 = vld [vmem:[#allocation3 + $0x7e8] sm:$0xff]
    %v804 = vld [vmem:[#allocation3 + $0x7f0] sm:$0xff]
    %v805 = vld [vmem:[#allocation3 + $0x7f8] sm:$0xff]
    %v806 = vld [vmem:[%s2] sm:$0x1]
    %v808 = vlaneseq
    %v809 = vshrl.u32 %v808, 7
    %v810 = vsub.s32 0, %v809
    %v811 = vrot.slane %v806, %v810
    %v845 = vrot.slane %v534, 7
    %vm846 = vcmask 1041409
    %v847 = vsel %vm846, %v845, %v518
    %v848 = vrot.slane %v535, 7
    %v849 = vsel %vm846, %v848, %v519
    %v850 = vrot.slane %v536, 7
    %v851 = vsel %vm846, %v850, %v520
    %v852 = vrot.slane %v537, 7
    %v853 = vsel %vm846, %v852, %v521
    %v854 = vrot.slane %v538, 7
    %v855 = vsel %vm846, %v854, %v522
    %v856 = vrot.slane %v539, 7
    %v857 = vsel %vm846, %v856, %v523
    %v858 = vrot.slane %v540, 7
    %v859 = vsel %vm846, %v858, %v524
    %v860 = vrot.slane %v541, 7
    %v861 = vsel %vm846, %v860, %v525
    %v862 = vrot.slane %v542, 7
    %v863 = vsel %vm846, %v862, %v526
    %v864 = vrot.slane %v543, 7
    %v865 = vsel %vm846, %v864, %v527
    %v866 = vrot.slane %v544, 7
    %v867 = vsel %vm846, %v866, %v528
    %v868 = vrot.slane %v545, 7
    %v869 = vsel %vm846, %v868, %v529
    %v870 = vrot.slane %v546, 7
    %v871 = vsel %vm846, %v870, %v530
    %v872 = vrot.slane %v547, 7
    %v873 = vsel %vm846, %v872, %v531
    %v874 = vrot.slane %v548, 7
    %v875 = vsel %vm846, %v874, %v532
    %v876 = vrot.slane %v549, 7
    %v877 = vsel %vm846, %v876, %v533
    %894 = vmatprep.subr.mxu0 0.0
    %895 = vmatpush1.msra.mxu0 %v565
    %896 = vmatprep.subr.mxu0 0.0
    %897 = vmatpush1.msra.mxu0 %v564
    %898 = vmatprep.subr.mxu0 0.0
    %899 = vmatpush1.msra.mxu0 %v563
    %900 = vmatprep.subr.mxu0 0.0
    %901 = vmatpush1.msra.mxu0 %v562
    %902 = vmatprep.subr.mxu0 0.0
    %903 = vmatpush1.msra.mxu0 %v561
    %904 = vmatprep.subr.mxu0 0.0
    %905 = vmatpush1.msra.mxu0 %v560
    %906 = vmatprep.subr.mxu0 0.0
    %907 = vmatpush1.msra.mxu0 %v559
    %908 = vmatprep.subr.mxu0 0.0
    %909 = vmatpush1.msra.mxu0 %v558
    %910 = vmatprep.subr.mxu0 0.0
    %911 = vmatpush1.msra.mxu0 %v557
    %912 = vmatprep.subr.mxu0 0.0
    %913 = vmatpush1.msra.mxu0 %v556
    %914 = vmatprep.subr.mxu0 0.0
    %915 = vmatpush1.msra.mxu0 %v555
    %916 = vmatprep.subr.mxu0 0.0
    %917 = vmatpush1.msra.mxu0 %v554
    %918 = vmatprep.subr.mxu0 0.0
    %919 = vmatpush1.msra.mxu0 %v553
    %920 = vmatprep.subr.mxu0 0.0
    %921 = vmatpush1.msra.mxu0 %v552
    %922 = vmatprep.subr.mxu0 0.0
    %923 = vmatpush1.msra.mxu0 %v551
    %924 = vmatprep.subr.mxu0 0.0
    %925 = vmatpush1.msra.mxu0 %v550
    %926 = vmatprep.subr.mxu0 0.0
    %927 = vmatpush2.msra.mxu0 %v581
    %928 = vmatprep.subr.mxu0 0.0
    %929 = vmatpush2.msra.mxu0 %v580
    %930 = vmatprep.subr.mxu0 0.0
    %931 = vmatpush2.msra.mxu0 %v579
    %932 = vmatprep.subr.mxu0 0.0
    %933 = vmatpush2.msra.mxu0 %v578
    %934 = vmatprep.subr.mxu0 0.0
    %935 = vmatpush2.msra.mxu0 %v577
    %936 = vmatprep.subr.mxu0 0.0
    %937 = vmatpush2.msra.mxu0 %v576
    %938 = vmatprep.subr.mxu0 0.0
    %939 = vmatpush2.msra.mxu0 %v575
    %940 = vmatprep.subr.mxu0 0.0
    %941 = vmatpush2.msra.mxu0 %v574
    %942 = vmatprep.subr.mxu0 0.0
    %943 = vmatpush2.msra.mxu0 %v573
    %944 = vmatprep.subr.mxu0 0.0
    %945 = vmatpush2.msra.mxu0 %v572
    %946 = vmatprep.subr.mxu0 0.0
    %947 = vmatpush2.msra.mxu0 %v571
    %948 = vmatprep.subr.mxu0 0.0
    %949 = vmatpush2.msra.mxu0 %v570
    %950 = vmatprep.subr.mxu0 0.0
    %951 = vmatpush2.msra.mxu0 %v569
    %952 = vmatprep.subr.mxu0 0.0
    %953 = vmatpush2.msra.mxu0 %v568
    %954 = vmatprep.subr.mxu0 0.0
    %955 = vmatpush2.msra.mxu0 %v567
    %956 = vmatprep.subr.mxu0 0.0
    %957 = vmatpush2.msra.mxu0 %v566
    %958 = vmatprep.mubr.f32.mxu0 %v849
    %959 = vmatmul.mubr.f32.gmra.mxu0 %v847
    %v960 = vpop.f32.mrf.mxu0
    %v961 = vadd.f32 %v811, %v960
    %v962 = vpop.f32.mrf.mxu0
    %963 = vdwg.mxu0
    %964 = vmatprep.subr.mxu0 0.0
    %965 = vmatpush1.msra.mxu0 %v597
    %966 = vmatprep.subr.mxu0 0.0
    %967 = vmatpush1.msra.mxu0 %v596
    %968 = vmatprep.subr.mxu0 0.0
    %969 = vmatpush1.msra.mxu0 %v595
    %970 = vmatprep.subr.mxu0 0.0
    %971 = vmatpush1.msra.mxu0 %v594
    %972 = vmatprep.subr.mxu0 0.0
    %973 = vmatpush1.msra.mxu0 %v593
    %974 = vmatprep.subr.mxu0 0.0
    %975 = vmatpush1.msra.mxu0 %v592
    %976 = vmatprep.subr.mxu0 0.0
    %977 = vmatpush1.msra.mxu0 %v591
    %978 = vmatprep.subr.mxu0 0.0
    %979 = vmatpush1.msra.mxu0 %v590
    %980 = vmatprep.subr.mxu0 0.0
    %981 = vmatpush1.msra.mxu0 %v589
    %982 = vmatprep.subr.mxu0 0.0
    %983 = vmatpush1.msra.mxu0 %v588
    %984 = vmatprep.subr.mxu0 0.0
    %985 = vmatpush1.msra.mxu0 %v587
    %986 = vmatprep.subr.mxu0 0.0
    %987 = vmatpush1.msra.mxu0 %v586
    %988 = vmatprep.subr.mxu0 0.0
    %989 = vmatpush1.msra.mxu0 %v585
    %990 = vmatprep.subr.mxu0 0.0
    %991 = vmatpush1.msra.mxu0 %v584
    %992 = vmatprep.subr.mxu0 0.0
    %993 = vmatpush1.msra.mxu0 %v583
    %994 = vmatprep.subr.mxu0 0.0
    %995 = vmatpush1.msra.mxu0 %v582
    %996 = vmatprep.subr.mxu0 0.0
    %997 = vmatpush2.msra.mxu0 %v613
    %998 = vmatprep.subr.mxu0 0.0
    %999 = vmatpush2.msra.mxu0 %v612
    %1000 = vmatprep.subr.mxu0 0.0
    %1001 = vmatpush2.msra.mxu0 %v611
    %1002 = vmatprep.subr.mxu0 0.0
    %1003 = vmatpush2.msra.mxu0 %v610
    %1004 = vmatprep.subr.mxu0 0.0
    %1005 = vmatpush2.msra.mxu0 %v609
    %1006 = vmatprep.subr.mxu0 0.0
    %1007 = vmatpush2.msra.mxu0 %v608
    %1008 = vmatprep.subr.mxu0 0.0
    %1009 = vmatpush2.msra.mxu0 %v607
    %1010 = vmatprep.subr.mxu0 0.0
    %1011 = vmatpush2.msra.mxu0 %v606
    %1012 = vmatprep.subr.mxu0 0.0
    %1013 = vmatpush2.msra.mxu0 %v605
    %1014 = vmatprep.subr.mxu0 0.0
    %1015 = vmatpush2.msra.mxu0 %v604
    %1016 = vmatprep.subr.mxu0 0.0
    %1017 = vmatpush2.msra.mxu0 %v603
    %1018 = vmatprep.subr.mxu0 0.0
    %1019 = vmatpush2.msra.mxu0 %v602
    %1020 = vmatprep.subr.mxu0 0.0
    %1021 = vmatpush2.msra.mxu0 %v601
    %1022 = vmatprep.subr.mxu0 0.0
    %1023 = vmatpush2.msra.mxu0 %v600
    %1024 = vmatprep.subr.mxu0 0.0
    %1025 = vmatpush2.msra.mxu0 %v599
    %1026 = vmatprep.subr.mxu0 0.0
    %1027 = vmatpush2.msra.mxu0 %v598
    %1028 = vmatprep.mubr.f32.mxu0 %v853
    %1029 = vmatmul.mubr.f32.gmra.mxu0 %v851
    %v1030 = vpop.f32.mrf.mxu0
    %v1031 = vadd.f32 %v961, %v1030
    %v1032 = vpop.f32.mrf.mxu0
    %1033 = vdwg.mxu0
    %1034 = vmatprep.subr.mxu0 0.0
    %1035 = vmatpush1.msra.mxu0 %v629
    %1036 = vmatprep.subr.mxu0 0.0
    %1037 = vmatpush1.msra.mxu0 %v628
    %1038 = vmatprep.subr.mxu0 0.0
    %1039 = vmatpush1.msra.mxu0 %v627
    %1040 = vmatprep.subr.mxu0 0.0
    %1041 = vmatpush1.msra.mxu0 %v626
    %1042 = vmatprep.subr.mxu0 0.0
    %1043 = vmatpush1.msra.mxu0 %v625
    %1044 = vmatprep.subr.mxu0 0.0
    %1045 = vmatpush1.msra.mxu0 %v624
    %1046 = vmatprep.subr.mxu0 0.0
    %1047 = vmatpush1.msra.mxu0 %v623
    %1048 = vmatprep.subr.mxu0 0.0
    %1049 = vmatpush1.msra.mxu0 %v622
    %1050 = vmatprep.subr.mxu0 0.0
    %1051 = vmatpush1.msra.mxu0 %v621
    %1052 = vmatprep.subr.mxu0 0.0
    %1053 = vmatpush1.msra.mxu0 %v620
    %1054 = vmatprep.subr.mxu0 0.0
    %1055 = vmatpush1.msra.mxu0 %v619
    %1056 = vmatprep.subr.mxu0 0.0
    %1057 = vmatpush1.msra.mxu0 %v618
    %1058 = vmatprep.subr.mxu0 0.0
    %1059 = vmatpush1.msra.mxu0 %v617
    %1060 = vmatprep.subr.mxu0 0.0
    %1061 = vmatpush1.msra.mxu0 %v616
    %1062 = vmatprep.subr.mxu0 0.0
    %1063 = vmatpush1.msra.mxu0 %v615
    %1064 = vmatprep.subr.mxu0 0.0
    %1065 = vmatpush1.msra.mxu0 %v614
    %1066 = vmatprep.subr.mxu0 0.0
    %1067 = vmatpush2.msra.mxu0 %v645
    %1068 = vmatprep.subr.mxu0 0.0
    %1069 = vmatpush2.msra.mxu0 %v644
    %1070 = vmatprep.subr.mxu0 0.0
    %1071 = vmatpush2.msra.mxu0 %v643
    %1072 = vmatprep.subr.mxu0 0.0
    %1073 = vmatpush2.msra.mxu0 %v642
    %1074 = vmatprep.subr.mxu0 0.0
    %1075 = vmatpush2.msra.mxu0 %v641
    %1076 = vmatprep.subr.mxu0 0.0
    %1077 = vmatpush2.msra.mxu0 %v640
    %1078 = vmatprep.subr.mxu0 0.0
    %1079 = vmatpush2.msra.mxu0 %v639
    %1080 = vmatprep.subr.mxu0 0.0
    %1081 = vmatpush2.msra.mxu0 %v638
    %1082 = vmatprep.subr.mxu0 0.0
    %1083 = vmatpush2.msra.mxu0 %v637
    %1084 = vmatprep.subr.mxu0 0.0
    %1085 = vmatpush2.msra.mxu0 %v636
    %1086 = vmatprep.subr.mxu0 0.0
    %1087 = vmatpush2.msra.mxu0 %v635
    %1088 = vmatprep.subr.mxu0 0.0
    %1089 = vmatpush2.msra.mxu0 %v634
    %1090 = vmatprep.subr.mxu0 0.0
    %1091 = vmatpush2.msra.mxu0 %v633
    %1092 = vmatprep.subr.mxu0 0.0
    %1093 = vmatpush2.msra.mxu0 %v632
    %1094 = vmatprep.subr.mxu0 0.0
    %1095 = vmatpush2.msra.mxu0 %v631
    %1096 = vmatprep.subr.mxu0 0.0
    %1097 = vmatpush2.msra.mxu0 %v630
    %1098 = vmatprep.mubr.f32.mxu0 %v857
    %1099 = vmatmul.mubr.f32.gmra.mxu0 %v855
    %v1100 = vpop.f32.mrf.mxu0
    %v1101 = vadd.f32 %v1031, %v1100
    %v1102 = vpop.f32.mrf.mxu0
    %1103 = vdwg.mxu0
    %1104 = vmatprep.subr.mxu0 0.0
    %1105 = vmatpush1.msra.mxu0 %v661
    %1106 = vmatprep.subr.mxu0 0.0
    %1107 = vmatpush1.msra.mxu0 %v660
    %1108 = vmatprep.subr.mxu0 0.0
    %1109 = vmatpush1.msra.mxu0 %v659
    %1110 = vmatprep.subr.mxu0 0.0
    %1111 = vmatpush1.msra.mxu0 %v658
    %1112 = vmatprep.subr.mxu0 0.0
    %1113 = vmatpush1.msra.mxu0 %v657
    %1114 = vmatprep.subr.mxu0 0.0
    %1115 = vmatpush1.msra.mxu0 %v656
    %1116 = vmatprep.subr.mxu0 0.0
    %1117 = vmatpush1.msra.mxu0 %v655
    %1118 = vmatprep.subr.mxu0 0.0
    %1119 = vmatpush1.msra.mxu0 %v654
    %1120 = vmatprep.subr.mxu0 0.0
    %1121 = vmatpush1.msra.mxu0 %v653
    %1122 = vmatprep.subr.mxu0 0.0
    %1123 = vmatpush1.msra.mxu0 %v652
    %1124 = vmatprep.subr.mxu0 0.0
    %1125 = vmatpush1.msra.mxu0 %v651
    %1126 = vmatprep.subr.mxu0 0.0
    %1127 = vmatpush1.msra.mxu0 %v650
    %1128 = vmatprep.subr.mxu0 0.0
    %1129 = vmatpush1.msra.mxu0 %v649
    %1130 = vmatprep.subr.mxu0 0.0
    %1131 = vmatpush1.msra.mxu0 %v648
    %1132 = vmatprep.subr.mxu0 0.0
    %1133 = vmatpush1.msra.mxu0 %v647
    %1134 = vmatprep.subr.mxu0 0.0
    %1135 = vmatpush1.msra.mxu0 %v646
    %1136 = vmatprep.subr.mxu0 0.0
    %1137 = vmatpush2.msra.mxu0 %v677
    %1138 = vmatprep.subr.mxu0 0.0
    %1139 = vmatpush2.msra.mxu0 %v676
    %1140 = vmatprep.subr.mxu0 0.0
    %1141 = vmatpush2.msra.mxu0 %v675
    %1142 = vmatprep.subr.mxu0 0.0
    %1143 = vmatpush2.msra.mxu0 %v674
    %1144 = vmatprep.subr.mxu0 0.0
    %1145 = vmatpush2.msra.mxu0 %v673
    %1146 = vmatprep.subr.mxu0 0.0
    %1147 = vmatpush2.msra.mxu0 %v672
    %1148 = vmatprep.subr.mxu0 0.0
    %1149 = vmatpush2.msra.mxu0 %v671
    %1150 = vmatprep.subr.mxu0 0.0
    %1151 = vmatpush2.msra.mxu0 %v670
    %1152 = vmatprep.subr.mxu0 0.0
    %1153 = vmatpush2.msra.mxu0 %v669
    %1154 = vmatprep.subr.mxu0 0.0
    %1155 = vmatpush2.msra.mxu0 %v668
    %1156 = vmatprep.subr.mxu0 0.0
    %1157 = vmatpush2.msra.mxu0 %v667
    %1158 = vmatprep.subr.mxu0 0.0
    %1159 = vmatpush2.msra.mxu0 %v666
    %1160 = vmatprep.subr.mxu0 0.0
    %1161 = vmatpush2.msra.mxu0 %v665
    %1162 = vmatprep.subr.mxu0 0.0
    %1163 = vmatpush2.msra.mxu0 %v664
    %1164 = vmatprep.subr.mxu0 0.0
    %1165 = vmatpush2.msra.mxu0 %v663
    %1166 = vmatprep.subr.mxu0 0.0
    %1167 = vmatpush2.msra.mxu0 %v662
    %1168 = vmatprep.mubr.f32.mxu0 %v861
    %1169 = vmatmul.mubr.f32.gmra.mxu0 %v859
    %v1170 = vpop.f32.mrf.mxu0
    %v1171 = vadd.f32 %v1101, %v1170
    %v1172 = vpop.f32.mrf.mxu0
    %1173 = vdwg.mxu0
    %1174 = vmatprep.subr.mxu0 0.0
    %1175 = vmatpush1.msra.mxu0 %v693
    %1176 = vmatprep.subr.mxu0 0.0
    %1177 = vmatpush1.msra.mxu0 %v692
    %1178 = vmatprep.subr.mxu0 0.0
    %1179 = vmatpush1.msra.mxu0 %v691
    %1180 = vmatprep.subr.mxu0 0.0
    %1181 = vmatpush1.msra.mxu0 %v690
    %1182 = vmatprep.subr.mxu0 0.0
    %1183 = vmatpush1.msra.mxu0 %v689
    %1184 = vmatprep.subr.mxu0 0.0
    %1185 = vmatpush1.msra.mxu0 %v688
    %1186 = vmatprep.subr.mxu0 0.0
    %1187 = vmatpush1.msra.mxu0 %v687
    %1188 = vmatprep.subr.mxu0 0.0
    %1189 = vmatpush1.msra.mxu0 %v686
    %1190 = vmatprep.subr.mxu0 0.0
    %1191 = vmatpush1.msra.mxu0 %v685
    %1192 = vmatprep.subr.mxu0 0.0
    %1193 = vmatpush1.msra.mxu0 %v684
    %1194 = vmatprep.subr.mxu0 0.0
    %1195 = vmatpush1.msra.mxu0 %v683
    %1196 = vmatprep.subr.mxu0 0.0
    %1197 = vmatpush1.msra.mxu0 %v682
    %1198 = vmatprep.subr.mxu0 0.0
    %1199 = vmatpush1.msra.mxu0 %v681
    %1200 = vmatprep.subr.mxu0 0.0
    %1201 = vmatpush1.msra.mxu0 %v680
    %1202 = vmatprep.subr.mxu0 0.0
    %1203 = vmatpush1.msra.mxu0 %v679
    %1204 = vmatprep.subr.mxu0 0.0
    %1205 = vmatpush1.msra.mxu0 %v678
    %1206 = vmatprep.subr.mxu0 0.0
    %1207 = vmatpush2.msra.mxu0 %v709
    %1208 = vmatprep.subr.mxu0 0.0
    %1209 = vmatpush2.msra.mxu0 %v708
    %1210 = vmatprep.subr.mxu0 0.0
    %1211 = vmatpush2.msra.mxu0 %v707
    %1212 = vmatprep.subr.mxu0 0.0
    %1213 = vmatpush2.msra.mxu0 %v706
    %1214 = vmatprep.subr.mxu0 0.0
    %1215 = vmatpush2.msra.mxu0 %v705
    %1216 = vmatprep.subr.mxu0 0.0
    %1217 = vmatpush2.msra.mxu0 %v704
    %1218 = vmatprep.subr.mxu0 0.0
    %1219 = vmatpush2.msra.mxu0 %v703
    %1220 = vmatprep.subr.mxu0 0.0
    %1221 = vmatpush2.msra.mxu0 %v702
    %1222 = vmatprep.subr.mxu0 0.0
    %1223 = vmatpush2.msra.mxu0 %v701
    %1224 = vmatprep.subr.mxu0 0.0
    %1225 = vmatpush2.msra.mxu0 %v700
    %1226 = vmatprep.subr.mxu0 0.0
    %1227 = vmatpush2.msra.mxu0 %v699
    %1228 = vmatprep.subr.mxu0 0.0
    %1229 = vmatpush2.msra.mxu0 %v698
    %1230 = vmatprep.subr.mxu0 0.0
    %1231 = vmatpush2.msra.mxu0 %v697
    %1232 = vmatprep.subr.mxu0 0.0
    %1233 = vmatpush2.msra.mxu0 %v696
    %1234 = vmatprep.subr.mxu0 0.0
    %1235 = vmatpush2.msra.mxu0 %v695
    %1236 = vmatprep.subr.mxu0 0.0
    %1237 = vmatpush2.msra.mxu0 %v694
    %1238 = vmatprep.mubr.f32.mxu0 %v865
    %1239 = vmatmul.mubr.f32.gmra.mxu0 %v863
    %v1240 = vpop.f32.mrf.mxu0
    %v1241 = vadd.f32 %v1171, %v1240
    %v1242 = vpop.f32.mrf.mxu0
    %1243 = vdwg.mxu0
    %1244 = vmatprep.subr.mxu0 0.0
    %1245 = vmatpush1.msra.mxu0 %v725
    %1246 = vmatprep.subr.mxu0 0.0
    %1247 = vmatpush1.msra.mxu0 %v724
    %1248 = vmatprep.subr.mxu0 0.0
    %1249 = vmatpush1.msra.mxu0 %v723
    %1250 = vmatprep.subr.mxu0 0.0
    %1251 = vmatpush1.msra.mxu0 %v722
    %1252 = vmatprep.subr.mxu0 0.0
    %1253 = vmatpush1.msra.mxu0 %v721
    %1254 = vmatprep.subr.mxu0 0.0
    %1255 = vmatpush1.msra.mxu0 %v720
    %1256 = vmatprep.subr.mxu0 0.0
    %1257 = vmatpush1.msra.mxu0 %v719
    %1258 = vmatprep.subr.mxu0 0.0
    %1259 = vmatpush1.msra.mxu0 %v718
    %1260 = vmatprep.subr.mxu0 0.0
    %1261 = vmatpush1.msra.mxu0 %v717
    %1262 = vmatprep.subr.mxu0 0.0
    %1263 = vmatpush1.msra.mxu0 %v716
    %1264 = vmatprep.subr.mxu0 0.0
    %1265 = vmatpush1.msra.mxu0 %v715
    %1266 = vmatprep.subr.mxu0 0.0
    %1267 = vmatpush1.msra.mxu0 %v714
    %1268 = vmatprep.subr.mxu0 0.0
    %1269 = vmatpush1.msra.mxu0 %v713
    %1270 = vmatprep.subr.mxu0 0.0
    %1271 = vmatpush1.msra.mxu0 %v712
    %1272 = vmatprep.subr.mxu0 0.0
    %1273 = vmatpush1.msra.mxu0 %v711
    %1274 = vmatprep.subr.mxu0 0.0
    %1275 = vmatpush1.msra.mxu0 %v710
    %1276 = vmatprep.subr.mxu0 0.0
    %1277 = vmatpush2.msra.mxu0 %v741
    %1278 = vmatprep.subr.mxu0 0.0
    %1279 = vmatpush2.msra.mxu0 %v740
    %1280 = vmatprep.subr.mxu0 0.0
    %1281 = vmatpush2.msra.mxu0 %v739
    %1282 = vmatprep.subr.mxu0 0.0
    %1283 = vmatpush2.msra.mxu0 %v738
    %1284 = vmatprep.subr.mxu0 0.0
    %1285 = vmatpush2.msra.mxu0 %v737
    %1286 = vmatprep.subr.mxu0 0.0
    %1287 = vmatpush2.msra.mxu0 %v736
    %1288 = vmatprep.subr.mxu0 0.0
    %1289 = vmatpush2.msra.mxu0 %v735
    %1290 = vmatprep.subr.mxu0 0.0
    %1291 = vmatpush2.msra.mxu0 %v734
    %1292 = vmatprep.subr.mxu0 0.0
    %1293 = vmatpush2.msra.mxu0 %v733
    %1294 = vmatprep.subr.mxu0 0.0
    %1295 = vmatpush2.msra.mxu0 %v732
    %1296 = vmatprep.subr.mxu0 0.0
    %1297 = vmatpush2.msra.mxu0 %v731
    %1298 = vmatprep.subr.mxu0 0.0
    %1299 = vmatpush2.msra.mxu0 %v730
    %1300 = vmatprep.subr.mxu0 0.0
    %1301 = vmatpush2.msra.mxu0 %v729
    %1302 = vmatprep.subr.mxu0 0.0
    %1303 = vmatpush2.msra.mxu0 %v728
    %1304 = vmatprep.subr.mxu0 0.0
    %1305 = vmatpush2.msra.mxu0 %v727
    %1306 = vmatprep.subr.mxu0 0.0
    %1307 = vmatpush2.msra.mxu0 %v726
    %1308 = vmatprep.mubr.f32.mxu0 %v869
    %1309 = vmatmul.mubr.f32.gmra.mxu0 %v867
    %v1310 = vpop.f32.mrf.mxu0
    %v1311 = vadd.f32 %v1241, %v1310
    %v1312 = vpop.f32.mrf.mxu0
    %1313 = vdwg.mxu0
    %1314 = vmatprep.subr.mxu0 0.0
    %1315 = vmatpush1.msra.mxu0 %v757
    %1316 = vmatprep.subr.mxu0 0.0
    %1317 = vmatpush1.msra.mxu0 %v756
    %1318 = vmatprep.subr.mxu0 0.0
    %1319 = vmatpush1.msra.mxu0 %v755
    %1320 = vmatprep.subr.mxu0 0.0
    %1321 = vmatpush1.msra.mxu0 %v754
    %1322 = vmatprep.subr.mxu0 0.0
    %1323 = vmatpush1.msra.mxu0 %v753
    %1324 = vmatprep.subr.mxu0 0.0
    %1325 = vmatpush1.msra.mxu0 %v752
    %1326 = vmatprep.subr.mxu0 0.0
    %1327 = vmatpush1.msra.mxu0 %v751
    %1328 = vmatprep.subr.mxu0 0.0
    %1329 = vmatpush1.msra.mxu0 %v750
    %1330 = vmatprep.subr.mxu0 0.0
    %1331 = vmatpush1.msra.mxu0 %v749
    %1332 = vmatprep.subr.mxu0 0.0
    %1333 = vmatpush1.msra.mxu0 %v748
    %1334 = vmatprep.subr.mxu0 0.0
    %1335 = vmatpush1.msra.mxu0 %v747
    %1336 = vmatprep.subr.mxu0 0.0
    %1337 = vmatpush1.msra.mxu0 %v746
    %1338 = vmatprep.subr.mxu0 0.0
    %1339 = vmatpush1.msra.mxu0 %v745
    %1340 = vmatprep.subr.mxu0 0.0
    %1341 = vmatpush1.msra.mxu0 %v744
    %1342 = vmatprep.subr.mxu0 0.0
    %1343 = vmatpush1.msra.mxu0 %v743
    %1344 = vmatprep.subr.mxu0 0.0
    %1345 = vmatpush1.msra.mxu0 %v742
    %1346 = vmatprep.subr.mxu0 0.0
    %1347 = vmatpush2.msra.mxu0 %v773
    %1348 = vmatprep.subr.mxu0 0.0
    %1349 = vmatpush2.msra.mxu0 %v772
    %1350 = vmatprep.subr.mxu0 0.0
    %1351 = vmatpush2.msra.mxu0 %v771
    %1352 = vmatprep.subr.mxu0 0.0
    %1353 = vmatpush2.msra.mxu0 %v770
    %1354 = vmatprep.subr.mxu0 0.0
    %1355 = vmatpush2.msra.mxu0 %v769
    %1356 = vmatprep.subr.mxu0 0.0
    %1357 = vmatpush2.msra.mxu0 %v768
    %1358 = vmatprep.subr.mxu0 0.0
    %1359 = vmatpush2.msra.mxu0 %v767
    %1360 = vmatprep.subr.mxu0 0.0
    %1361 = vmatpush2.msra.mxu0 %v766
    %1362 = vmatprep.subr.mxu0 0.0
    %1363 = vmatpush2.msra.mxu0 %v765
    %1364 = vmatprep.subr.mxu0 0.0
    %1365 = vmatpush2.msra.mxu0 %v764
    %1366 = vmatprep.subr.mxu0 0.0
    %1367 = vmatpush2.msra.mxu0 %v763
    %1368 = vmatprep.subr.mxu0 0.0
    %1369 = vmatpush2.msra.mxu0 %v762
    %1370 = vmatprep.subr.mxu0 0.0
    %1371 = vmatpush2.msra.mxu0 %v761
    %1372 = vmatprep.subr.mxu0 0.0
    %1373 = vmatpush2.msra.mxu0 %v760
    %1374 = vmatprep.subr.mxu0 0.0
    %1375 = vmatpush2.msra.mxu0 %v759
    %1376 = vmatprep.subr.mxu0 0.0
    %1377 = vmatpush2.msra.mxu0 %v758
    %1378 = vmatprep.mubr.f32.mxu0 %v873
    %1379 = vmatmul.mubr.f32.gmra.mxu0 %v871
    %v1380 = vpop.f32.mrf.mxu0
    %v1381 = vadd.f32 %v1311, %v1380
    %v1382 = vpop.f32.mrf.mxu0
    %1383 = vdwg.mxu0
    %1384 = vmatprep.subr.mxu0 0.0
    %1385 = vmatpush1.msra.mxu0 %v789
    %1386 = vmatprep.subr.mxu0 0.0
    %1387 = vmatpush1.msra.mxu0 %v788
    %1388 = vmatprep.subr.mxu0 0.0
    %1389 = vmatpush1.msra.mxu0 %v787
    %1390 = vmatprep.subr.mxu0 0.0
    %1391 = vmatpush1.msra.mxu0 %v786
    %1392 = vmatprep.subr.mxu0 0.0
    %1393 = vmatpush1.msra.mxu0 %v785
    %1394 = vmatprep.subr.mxu0 0.0
    %1395 = vmatpush1.msra.mxu0 %v784
    %1396 = vmatprep.subr.mxu0 0.0
    %1397 = vmatpush1.msra.mxu0 %v783
    %1398 = vmatprep.subr.mxu0 0.0
    %1399 = vmatpush1.msra.mxu0 %v782
    %1400 = vmatprep.subr.mxu0 0.0
    %1401 = vmatpush1.msra.mxu0 %v781
    %1402 = vmatprep.subr.mxu0 0.0
    %1403 = vmatpush1.msra.mxu0 %v780
    %1404 = vmatprep.subr.mxu0 0.0
    %1405 = vmatpush1.msra.mxu0 %v779
    %1406 = vmatprep.subr.mxu0 0.0
    %1407 = vmatpush1.msra.mxu0 %v778
    %1408 = vmatprep.subr.mxu0 0.0
    %1409 = vmatpush1.msra.mxu0 %v777
    %1410 = vmatprep.subr.mxu0 0.0
    %1411 = vmatpush1.msra.mxu0 %v776
    %1412 = vmatprep.subr.mxu0 0.0
    %1413 = vmatpush1.msra.mxu0 %v775
    %1414 = vmatprep.subr.mxu0 0.0
    %1415 = vmatpush1.msra.mxu0 %v774
    %1416 = vmatprep.subr.mxu0 0.0
    %1417 = vmatpush2.msra.mxu0 %v805
    %1418 = vmatprep.subr.mxu0 0.0
    %1419 = vmatpush2.msra.mxu0 %v804
    %1420 = vmatprep.subr.mxu0 0.0
    %1421 = vmatpush2.msra.mxu0 %v803
    %1422 = vmatprep.subr.mxu0 0.0
    %1423 = vmatpush2.msra.mxu0 %v802
    %1424 = vmatprep.subr.mxu0 0.0
    %1425 = vmatpush2.msra.mxu0 %v801
    %1426 = vmatprep.subr.mxu0 0.0
    %1427 = vmatpush2.msra.mxu0 %v800
    %1428 = vmatprep.subr.mxu0 0.0
    %1429 = vmatpush2.msra.mxu0 %v799
    %1430 = vmatprep.subr.mxu0 0.0
    %1431 = vmatpush2.msra.mxu0 %v798
    %1432 = vmatprep.subr.mxu0 0.0
    %1433 = vmatpush2.msra.mxu0 %v797
    %1434 = vmatprep.subr.mxu0 0.0
    %1435 = vmatpush2.msra.mxu0 %v796
    %1436 = vmatprep.subr.mxu0 0.0
    %1437 = vmatpush2.msra.mxu0 %v795
    %1438 = vmatprep.subr.mxu0 0.0
    %1439 = vmatpush2.msra.mxu0 %v794
    %1440 = vmatprep.subr.mxu0 0.0
    %1441 = vmatpush2.msra.mxu0 %v793
    %1442 = vmatprep.subr.mxu0 0.0
    %1443 = vmatpush2.msra.mxu0 %v792
    %1444 = vmatprep.subr.mxu0 0.0
    %1445 = vmatpush2.msra.mxu0 %v791
    %1446 = vmatprep.subr.mxu0 0.0
    %1447 = vmatpush2.msra.mxu0 %v790
    %1448 = vmatprep.mubr.f32.mxu0 %v877
    %1449 = vmatmul.mubr.f32.gmra.mxu0 %v875
    %v1450 = vpop.f32.mrf.mxu0
    %v1451 = vadd.f32 %v1381, %v1450
    %v1452 = vpop.f32.mrf.mxu0
    %1453 = vdwg.mxu0
    %v1454 = vld [vmem:[%s3] sm:$0xff]
    %v1455 = vld [vmem:[%s3 + $0x8] sm:$0xff]
    %v1456 = vld [vmem:[%s3 + $0x10] sm:$0xff]
    %v1457 = vld [vmem:[%s3 + $0x18] sm:$0xff]
    %v1458 = vld [vmem:[%s3 + $0x20] sm:$0xff]
    %v1459 = vld [vmem:[%s3 + $0x28] sm:$0xff]
    %v1460 = vld [vmem:[%s3 + $0x30] sm:$0xff]
    %v1461 = vld [vmem:[%s3 + $0x38] sm:$0xff]
    %v1462 = vld [vmem:[%s3 + $0x40] sm:$0xff]
    %v1463 = vld [vmem:[%s3 + $0x48] sm:$0xff]
    %v1464 = vld [vmem:[%s3 + $0x50] sm:$0xff]
    %v1465 = vld [vmem:[%s3 + $0x58] sm:$0xff]
    %v1466 = vld [vmem:[%s3 + $0x60] sm:$0xff]
    %v1467 = vld [vmem:[%s3 + $0x68] sm:$0xff]
    %v1468 = vld [vmem:[%s3 + $0x70] sm:$0xff]
    %v1469 = vld [vmem:[%s3 + $0x78] sm:$0xff]
    %v1470 = vld [vmem:[%s4] sm:$0x1]
    %v1472 = vlaneseq
    %v1473 = vshrl.u32 %v1472, 7
    %v1474 = vsub.s32 0, %v1473
    %v1475 = vrot.slane %v1470, %v1474
    %1477 = vmatprep.subr.mxu0 0.0
    %1478 = vmatpush1.msra.mxu0 %v1469
    %1479 = vmatprep.subr.mxu0 0.0
    %1480 = vmatpush1.msra.mxu0 %v1468
    %1481 = vmatprep.subr.mxu0 0.0
    %1482 = vmatpush1.msra.mxu0 %v1467
    %1483 = vmatprep.subr.mxu0 0.0
    %1484 = vmatpush1.msra.mxu0 %v1466
    %1485 = vmatprep.subr.mxu0 0.0
    %1486 = vmatpush1.msra.mxu0 %v1465
    %1487 = vmatprep.subr.mxu0 0.0
    %1488 = vmatpush1.msra.mxu0 %v1464
    %1489 = vmatprep.subr.mxu0 0.0
    %1490 = vmatpush1.msra.mxu0 %v1463
    %1491 = vmatprep.subr.mxu0 0.0
    %1492 = vmatpush1.msra.mxu0 %v1462
    %1493 = vmatprep.subr.mxu0 0.0
    %1494 = vmatpush1.msra.mxu0 %v1461
    %1495 = vmatprep.subr.mxu0 0.0
    %1496 = vmatpush1.msra.mxu0 %v1460
    %1497 = vmatprep.subr.mxu0 0.0
    %1498 = vmatpush1.msra.mxu0 %v1459
    %1499 = vmatprep.subr.mxu0 0.0
    %1500 = vmatpush1.msra.mxu0 %v1458
    %1501 = vmatprep.subr.mxu0 0.0
    %1502 = vmatpush1.msra.mxu0 %v1457
    %1503 = vmatprep.subr.mxu0 0.0
    %1504 = vmatpush1.msra.mxu0 %v1456
    %1505 = vmatprep.subr.mxu0 0.0
    %1506 = vmatpush1.msra.mxu0 %v1455
    %1507 = vmatprep.subr.mxu0 0.0
    %1508 = vmatpush1.msra.mxu0 %v1454
    %1509 = vmatprep.subr.mxu0 0.0
    %1510 = vmatpush2.msra.mxu0 0.0
    %1511 = vmatprep.subr.mxu0 0.0
    %1512 = vmatpush2.msra.mxu0 0.0
    %1513 = vmatprep.subr.mxu0 0.0
    %1514 = vmatpush2.msra.mxu0 0.0
    %1515 = vmatprep.subr.mxu0 0.0
    %1516 = vmatpush2.msra.mxu0 0.0
    %1517 = vmatprep.subr.mxu0 0.0
    %1518 = vmatpush2.msra.mxu0 0.0
    %1519 = vmatprep.subr.mxu0 0.0
    %1520 = vmatpush2.msra.mxu0 0.0
    %1521 = vmatprep.subr.mxu0 0.0
    %1522 = vmatpush2.msra.mxu0 0.0
    %1523 = vmatprep.subr.mxu0 0.0
    %1524 = vmatpush2.msra.mxu0 0.0
    %1525 = vmatprep.subr.mxu0 0.0
    %1526 = vmatpush2.msra.mxu0 0.0
    %1527 = vmatprep.subr.mxu0 0.0
    %1528 = vmatpush2.msra.mxu0 0.0
    %1529 = vmatprep.subr.mxu0 0.0
    %1530 = vmatpush2.msra.mxu0 0.0
    %1531 = vmatprep.subr.mxu0 0.0
    %1532 = vmatpush2.msra.mxu0 0.0
    %1533 = vmatprep.subr.mxu0 0.0
    %1534 = vmatpush2.msra.mxu0 0.0
    %1535 = vmatprep.subr.mxu0 0.0
    %1536 = vmatpush2.msra.mxu0 0.0
    %1537 = vmatprep.subr.mxu0 0.0
    %1538 = vmatpush2.msra.mxu0 0.0
    %1539 = vmatprep.subr.mxu0 0.0
    %1540 = vmatpush2.msra.mxu0 0.0
    %1541 = vmatprep.mubr.f32.mxu0 0.0
    %1542 = vmatmul.mubr.f32.gmra.mxu0 %v1451
    %v1543 = vpop.f32.mrf.mxu0
    %v1544 = vadd.f32 %v1475, %v1543
    %v1545 = vpop.f32.mrf.mxu0
    %1546 = vdwg.mxu0
    %v1547 = vmax.f32 %v1544, 0.0
    %v1548 = vld [vmem:[%s5] sm:$0x1]
    %v1550 = vlaneseq
    %v1551 = vshrl.u32 %v1550, 7
    %v1552 = vsub.s32 0, %v1551
    %v1553 = vrot.slane %v1548, %v1552
    %v1555 = vmul.f32 %v1547, %v1553
    %vm1556 = vcmask 254976
    %v1557 = vsel %vm1556, %v1555, 0.0
    %1558 = vadd.xlane.f32.xlu0 %v1557
    %v1559 = vpop.xlane.xlu0 %1558
    %v1560 = vld [vmem:[#allocation2] sm:$0x1]
    %v1562 = vlaneseq
    %v1563 = vshrl.u32 %v1562, 7
    %v1564 = vsub.s32 0, %v1563
    %v1565 = vrot.slane %v1560, %v1564
    %v1567 = vadd.f32 %v1559, %v1565
    %v1568 = vxor.u32 %v1567, 2147483648
    %v1569 = vmul.f32 %v1568, 1.442695
    %v1570 = vpow.pop %v1569
    %v1571 = vadd.f32 %v1570, 1.0
    %v1572 = vrcp.pop %v1571
    %v1573 = vmul.f32 1.0, %v1572
    %vm1574 = vcmask 1024
    %1575 = vst.msk [vmem:[%s7] sm:$0x3] %vm1574, %v1573
    // Predicated region
    $region41: #{tpu_custom_call.1} parent=1 // pred_check
      _
    $region42: #{tpu_custom_call.1} parent=1 // pred_check_branch
      %1577 = sbr.rel (0) target = $region44
    $region43: #{tpu_custom_call.1} parent=1 // pred_region
      _
    $region44: #{tpu_custom_call.1} parent=1 // pred_fallthru
      _
    // Predicated region
    $region45: #{tpu_custom_call.1} parent=1 // pred_check
      _
    $region46: #{tpu_custom_call.1} parent=1 // pred_check_branch
      %1579 = sbr.rel (0) target = $region48
    $region47: #{tpu_custom_call.1} parent=1 // pred_region
      _
    $region48: #{tpu_custom_call.1} parent=1 // pred_fallthru
      _
    %1580 = vsyncpa [#allocation4], 1

</llo_original>
